<compile_context>
chip_gen: v7x
topology: tpu7x:2x2x1
jax: 0.10.0
libtpu: 0.0.40
codegen_flags: <defaults>
</compile_context>

<pallas_src>
import functools

import jax
import jax.numpy as jnp
from jax.experimental import pallas as pl
from jax.experimental.pallas import tpu as pltpu

# ---- "chat_config" constants (synthetic, deterministic) -------------------
VOCAB_SIZE   = 32     # len(chat_config.ws)
ENCODER_DIM  = 32     # chat_config.ENCODER_DIM
HIDDEN_SIZE  = 32     # chat_config.HIDDEN_SIZE
NUM_LAYERS   = 2      # chat_config.NUM_LAYERS
PAD          = 0      # chat_config.ws.PAD  (also the padding_value)


# ---------------------------------------------------------------------------
# Fused Pallas kernel: tokens -> embedding -> all GRU layers (wavefronted) -> out / hidden.
# ---------------------------------------------------------------------------
def _encoder_kernel(tok_ref, len_ref, w0_ref, wblk_ref, b_ref, out_ref, hfin_ref,
                    *, num_layers, seq_len, batch, hidden, vocab, blk_w):
    T, B, H, L, V = seq_len, batch, hidden, num_layers, vocab
    H3 = 3 * H
    pad_f = jnp.float32(PAD)

    # ---- hoisted: one-hot token rows @ (embedding fused with layer-0 input proj + gate bias)
    tok = tok_ref[...]                                            # (T*B, 1) int32, row = t*B + b
    col = jax.lax.broadcasted_iota(jnp.int32, (T * B, V), 1)
    onehot = (tok == col).astype(jnp.float32)                     # (T*B, V)
    gi0 = jnp.dot(onehot, w0_ref[...],
                  preferred_element_type=jnp.float32)             # (T*B, 3H), bias already folded

    w_blk = wblk_ref[...]                                         # ((2L-1)*H, (2L-1)*blk_w)
    biases = b_ref[...]                                           # (L, 4H): [b_gates | b_hn]

    # ---- per-timestep validity masks (single broadcast, reused as vselect predicates)
    lens_bh = jnp.broadcast_to(len_ref[...], (B, H))              # (B, H) int32
    step_valid = [lens_bh > t for t in range(T)]                  # T x (B, H) bool

    zeros_bh = jnp.zeros((B, H), jnp.float32)
    h = [zeros_bh] * L                                            # per-layer hidden, registers only
    outs = [[None] * T for _ in range(L)]                         # per-layer per-step outputs

    # ---- wavefront over (layer, time): wavefront step s runs layer l at time t = s - l.
    for s in range(T + L - 1):
        # One fused MXU issue per wavefront step:
        #   [h_0 .. h_{L-1}, x_1 .. x_{L-1}] @ block_diag(W_hh_0^T .. W_hh_{L-1}^T,
        #                                                 W_ih_1^T .. W_ih_{L-1}^T)
        # Column blocks are 128-lane padded so every result slice stays inside one vreg.
        lhs_parts = list(h)
        for l in range(1, L):
            t_l = s - l
            lhs_parts.append(outs[l - 1][t_l] if 0 <= t_l < T else zeros_bh)
        lhs = jnp.concatenate(lhs_parts, axis=-1)                 # (B, (2L-1)*H)
        res = jnp.dot(lhs, w_blk,
                      preferred_element_type=jnp.float32)         # (B, (2L-1)*blk_w)

        for l in range(L):
            t = s - l
            if not 0 <= t < T:
                continue                                          # this layer is idle at step s
            gh = res[:, l * blk_w:l * blk_w + H3]                 # (B, 3H)  = h_l @ W_hh_l^T
            if l == 0:
                gi = gi0[t * B:(t + 1) * B, :]                    # hoisted embedding+proj (+bias)
            else:
                c0 = (L + l - 1) * blk_w
                gi = res[:, c0:c0 + H3] + biases[l:l + 1, 0:H3]   # x_l @ W_ih_l^T + gate bias
            b_hn = biases[l:l + 1, H3:H3 + H]                     # (1, H) n-gate hidden bias

            # PyTorch GRU gate math (gate order r, z, n); r/z sigmoid fused into one issue.
            rz = jax.nn.sigmoid(gi[:, 0:2 * H] + gh[:, 0:2 * H])
            r, z = rz[:, 0:H], rz[:, H:2 * H]
            n = jnp.tanh(gi[:, 2 * H:H3] + r * (gh[:, 2 * H:H3] + b_hn))
            h_new = (1.0 - z) * n + z * h[l]

            m = step_valid[t]
            outs[l][t] = jnp.where(m, h_new, pad_f)               # pad_packed: PAD at padded steps
            h[l] = jnp.where(m, h_new, h[l])                      # pack: freeze hidden state

    # ---- deferred, lane-dense writebacks (one store each)
    out_ref[...] = jnp.concatenate(outs[L - 1], axis=-1)          # (B, T*H) batch-major, lane-dense
    hfin_ref[...] = jnp.concatenate(h, axis=0)                    # (L*B, H)


# ---------------------------------------------------------------------------
# Parameter init (matches torch nn.GRU / nn.Embedding layout).
# ---------------------------------------------------------------------------
def init_params(key):
    params = {}
    k_emb, key = jax.random.split(key)
    emb = 0.1 * jax.random.normal(k_emb, (VOCAB_SIZE, ENCODER_DIM), jnp.float32)
    emb = emb.at[PAD].set(0.0)                    # padding_idx=PAD
    params["embedding"] = emb

    layers = []
    d_in = ENCODER_DIM
    for _ in range(NUM_LAYERS):
        k1, k2, k3, k4, key = jax.random.split(key, 5)
        w_ih = 0.1 * jax.random.normal(k1, (3 * HIDDEN_SIZE, d_in), jnp.float32)
        w_hh = 0.1 * jax.random.normal(k2, (3 * HIDDEN_SIZE, HIDDEN_SIZE), jnp.float32)
        b_ih = 0.1 * jax.random.normal(k3, (3 * HIDDEN_SIZE,), jnp.float32)
        b_hh = 0.1 * jax.random.normal(k4, (3 * HIDDEN_SIZE,), jnp.float32)
        layers.append((w_ih, w_hh, b_ih, b_hh))
        d_in = HIDDEN_SIZE
    params["gru_layers"] = layers
    return params


def _pad_cols(a, width):
    return jnp.pad(a, ((0, 0), (0, width - a.shape[1])))


def pack_params(params):
    """One-time weight prep (outside the per-call path): fold torch-layout params into the
    fused forms the kernel consumes."""
    H = HIDDEN_SIZE
    H3 = 3 * H
    blk_w = ((H3 + 127) // 128) * 128             # 128-lane-aligned column blocks
    emb = params["embedding"].astype(jnp.float32)

    hh_blocks, ih_blocks, bias_rows = [], [], []
    w0 = None
    for l, (w_ih, w_hh, b_ih, b_hh) in enumerate(params["gru_layers"]):
        b_g = b_ih + jnp.concatenate([b_hh[:2 * H], jnp.zeros((H,), b_hh.dtype)])  # b_ih+[b_hr,b_hz,0]
        b_hn = b_hh[2 * H:]
        if l == 0:
            # Fused embedding + layer-0 input projection + layer-0 gate bias: a one-hot row
            # selects exactly one row, so gi0[token v] = emb[v] @ W_ih0^T + b_g0.
            w0 = emb @ w_ih.T.astype(jnp.float32) + b_g[None, :].astype(jnp.float32)
        else:
            ih_blocks.append(_pad_cols(w_ih.T.astype(jnp.float32), blk_w))
        hh_blocks.append(_pad_cols(w_hh.T.astype(jnp.float32), blk_w))
        bias_rows.append(jnp.concatenate([b_g, b_hn]).astype(jnp.float32))

    w_blk = jax.scipy.linalg.block_diag(*(hh_blocks + ih_blocks))  # ((2L-1)H, (2L-1)*blk_w)
    biases = jnp.stack(bias_rows, axis=0)                          # (L, 4H); layer-0 gate part unused
    return {"w0": w0, "w_blk": w_blk, "biases": biases}


# ---------------------------------------------------------------------------
# CHATEncoder forward: one fused Pallas kernel, essentially no XLA glue.
# ---------------------------------------------------------------------------
def chat_encoder_forward(packed, data, data_len):
    """data: (B, T) int32 token ids; data_len: (B,) int32 valid lengths.
    Returns (out (B, T, H), hidden (NUM_LAYERS, B, H)) — matching torch semantics."""
    B, T = data.shape
    H, L = HIDDEN_SIZE, NUM_LAYERS
    V = packed["w0"].shape[0]
    blk_w = packed["w_blk"].shape[1] // (2 * L - 1)

    # Only remaining host-side glue: 64-byte int32 reshapes (time-major token rows, lengths column).
    tok = data.T.reshape(T * B, 1).astype(jnp.int32)
    lens = data_len.reshape(B, 1).astype(jnp.int32)

    kernel = functools.partial(_encoder_kernel, num_layers=L, seq_len=T, batch=B,
                               hidden=H, vocab=V, blk_w=blk_w)
    vmem = pl.BlockSpec(memory_space=pltpu.MemorySpace.VMEM)

    out_flat, hid_flat = pl.pallas_call(
        kernel,
        in_specs=[vmem] * 5,
        out_specs=[vmem, vmem],
        out_shape=[jax.ShapeDtypeStruct((B, T * H), jnp.float32),
                   jax.ShapeDtypeStruct((L * B, H), jnp.float32)],
    )(tok, lens, packed["w0"], packed["w_blk"], packed["biases"])

    # Row-major bitcast reshapes (free): (B, T*H) -> (B, T, H); (L*B, H) -> (L, B, H).
    return out_flat.reshape(B, T, H), hid_flat.reshape(L, B, H)


# ---------------------------------------------------------------------------
# Pure-JAX reference (no Pallas) for correctness checking.
# ---------------------------------------------------------------------------
def _reference_forward(params, data, data_len):
    B, T = data.shape
    H = HIDDEN_SIZE
    emb = jnp.take(params["embedding"], data, axis=0)                     # (B, T, E)
    x = jnp.transpose(emb, (1, 0, 2)).astype(jnp.float32)                 # (T, B, E)
    mask = (jnp.arange(T)[:, None] < data_len[None, :]).astype(jnp.float32)[..., None]

    hiddens = []
    for (w_ih, w_hh, b_ih, b_hh) in params["gru_layers"]:
        def step(h, xm, w_ih=w_ih, w_hh=w_hh, b_ih=b_ih, b_hh=b_hh):
            x_t, m = xm
            gi = x_t @ w_ih.T + b_ih
            gh = h @ w_hh.T + b_hh
            r = jax.nn.sigmoid(gi[:, 0:H] + gh[:, 0:H])
            z = jax.nn.sigmoid(gi[:, H:2 * H] + gh[:, H:2 * H])
            n = jnp.tanh(gi[:, 2 * H:] + r * gh[:, 2 * H:])
            h_new = (1.0 - z) * n + z * h
            h_next = h + m * (h_new - h)
            return h_next, m * h_new
        h_fin, outs = jax.lax.scan(step, jnp.zeros((B, H), jnp.float32), (x, mask))
        hiddens.append(h_fin)
        x = outs
    return jnp.transpose(x, (1, 0, 2)), jnp.stack(hiddens, axis=0)


if __name__ == "__main__":
    key = jax.random.PRNGKey(0)
    params = init_params(key)
    packed = pack_params(params)                  # one-time weight folding/fusion

    B, T = 2, 8
    k_tok, _ = jax.random.split(jax.random.PRNGKey(0))
    data_len = jnp.array([8, 5], dtype=jnp.int32)                 # sorted descending (pack convention)
    tokens = jax.random.randint(k_tok, (B, T), 1, VOCAB_SIZE, dtype=jnp.int32)
    pos = jnp.arange(T)[None, :]
    data = jnp.where(pos < data_len[:, None], tokens, PAD).astype(jnp.int32)

    fwd = jax.jit(chat_encoder_forward)
    out, hidden = fwd(packed, data, data_len)
    jax.block_until_ready((out, hidden))

    assert out.shape == (B, T, HIDDEN_SIZE)
    assert hidden.shape == (NUM_LAYERS, B, HIDDEN_SIZE)
    # Padded positions of the output must equal PAD (=0.0).
    assert bool(jnp.all(out[1, 5:, :] == float(PAD)))

    # Cross-check against a pure-JAX reference GRU.
    ref_out, ref_hidden = _reference_forward(params, data, data_len)
    assert bool(jnp.allclose(out, ref_out, atol=5e-4, rtol=5e-4))
    assert bool(jnp.allclose(hidden, ref_hidden, atol=5e-4, rtol=5e-4))

    print("KERNEL_OK")
</pallas_src>

<mosaic_0001>
module attributes {stable_mosaic.version = 11 : i64} {
  func.func @_encoder_kernel(%arg0: memref<16x1xi32, #tpu.memory_space<vmem>>, %arg1: memref<2x1xi32, #tpu.memory_space<vmem>>, %arg2: memref<32x96xf32, #tpu.memory_space<vmem>>, %arg3: memref<96x384xf32, #tpu.memory_space<vmem>>, %arg4: memref<2x128xf32, #tpu.memory_space<vmem>>, %arg5: memref<2x256xf32, #tpu.memory_space<vmem>>, %arg6: memref<4x32xf32, #tpu.memory_space<vmem>>) attributes {dimension_semantics = [], scalar_prefetch = 0 : i64, scratch_operands = 0 : i64, tpu.core_type = #tpu.core_type<tc>} {
    %c0 = arith.constant 0 : index
    %c0_0 = arith.constant 0 : index
    %0 = vector.load %arg0[%c0, %c0_0] : memref<16x1xi32, #tpu.memory_space<vmem>>, vector<16x1xi32>
    %1 = tpu.iota {dimensions = array<i32: 1>} : vector<16x32xi32>
    %2 = vector.broadcast %0 : vector<16x1xi32> to vector<16x32xi32>
    %3 = arith.cmpi eq, %2, %1 : vector<16x32xi32>
    %4 = arith.extui %3 : vector<16x32xi1> to vector<16x32xi32>
    %5 = arith.sitofp %4 : vector<16x32xi32> to vector<16x32xf32>
    %c0_1 = arith.constant 0 : index
    %c0_2 = arith.constant 0 : index
    %6 = vector.load %arg2[%c0_1, %c0_2] : memref<32x96xf32, #tpu.memory_space<vmem>>, vector<32x96xf32>
    %cst = arith.constant dense<0.000000e+00> : vector<16x96xf32>
    %7 = tpu.matmul %5, %6, %cst {dimension_numbers = #tpu.dot_dimension_numbers<[1], [0], [0], [1], [0, 0, 1, 1], [], []>} : vector<16x32xf32>, vector<32x96xf32>, vector<16x96xf32> -> vector<16x96xf32>
    %c0_3 = arith.constant 0 : index
    %c0_4 = arith.constant 0 : index
    %8 = vector.load %arg3[%c0_3, %c0_4] : memref<96x384xf32, #tpu.memory_space<vmem>>, vector<96x384xf32>
    %c0_5 = arith.constant 0 : index
    %c0_6 = arith.constant 0 : index
    %9 = vector.load %arg4[%c0_5, %c0_6] : memref<2x128xf32, #tpu.memory_space<vmem>>, vector<2x128xf32>
    %c0_7 = arith.constant 0 : index
    %c0_8 = arith.constant 0 : index
    %10 = vector.load %arg1[%c0_7, %c0_8] : memref<2x1xi32, #tpu.memory_space<vmem>>, vector<2x1xi32>
    %11 = vector.shape_cast %10 : vector<2x1xi32> to vector<2x1xi32>
    %12 = vector.broadcast %11 : vector<2x1xi32> to vector<2x32xi32>
    %c0_i32 = arith.constant 0 : i32
    %13 = vector.broadcast %c0_i32 : i32 to vector<2x32xi32>
    %14 = arith.cmpi sgt, %12, %13 : vector<2x32xi32>
    %c1_i32 = arith.constant 1 : i32
    %15 = vector.broadcast %c1_i32 : i32 to vector<2x32xi32>
    %16 = arith.cmpi sgt, %12, %15 : vector<2x32xi32>
    %c2_i32 = arith.constant 2 : i32
    %17 = vector.broadcast %c2_i32 : i32 to vector<2x32xi32>
    %18 = arith.cmpi sgt, %12, %17 : vector<2x32xi32>
    %c3_i32 = arith.constant 3 : i32
    %19 = vector.broadcast %c3_i32 : i32 to vector<2x32xi32>
    %20 = arith.cmpi sgt, %12, %19 : vector<2x32xi32>
    %c4_i32 = arith.constant 4 : i32
    %21 = vector.broadcast %c4_i32 : i32 to vector<2x32xi32>
    %22 = arith.cmpi sgt, %12, %21 : vector<2x32xi32>
    %c5_i32 = arith.constant 5 : i32
    %23 = vector.broadcast %c5_i32 : i32 to vector<2x32xi32>
    %24 = arith.cmpi sgt, %12, %23 : vector<2x32xi32>
    %c6_i32 = arith.constant 6 : i32
    %25 = vector.broadcast %c6_i32 : i32 to vector<2x32xi32>
    %26 = arith.cmpi sgt, %12, %25 : vector<2x32xi32>
    %c7_i32 = arith.constant 7 : i32
    %27 = vector.broadcast %c7_i32 : i32 to vector<2x32xi32>
    %28 = arith.cmpi sgt, %12, %27 : vector<2x32xi32>
    %cst_9 = arith.constant 0.000000e+00 : f32
    %29 = vector.broadcast %cst_9 : f32 to vector<2x32xf32>
    %30 = tpu.concatenate %29, %29, %29 in 1 : vector<2x32xf32>, vector<2x32xf32>, vector<2x32xf32> -> vector<2x96xf32>
    %cst_10 = arith.constant dense<0.000000e+00> : vector<2x384xf32>
    %31 = tpu.matmul %30, %8, %cst_10 {dimension_numbers = #tpu.dot_dimension_numbers<[1], [0], [0], [1], [0, 0, 1, 1], [], []>} : vector<2x96xf32>, vector<96x384xf32>, vector<2x384xf32> -> vector<2x384xf32>
    %32 = vector.extract_strided_slice %31 {offsets = [0, 0], sizes = [2, 96], strides = [1, 1]} : vector<2x384xf32> to vector<2x96xf32>
    %33 = vector.extract_strided_slice %7 {offsets = [0, 0], sizes = [2, 96], strides = [1, 1]} : vector<16x96xf32> to vector<2x96xf32>
    %34 = vector.extract_strided_slice %9 {offsets = [0, 96], sizes = [1, 32], strides = [1, 1]} : vector<2x128xf32> to vector<1x32xf32>
    %35 = vector.extract_strided_slice %33 {offsets = [0, 0], sizes = [2, 64], strides = [1, 1]} : vector<2x96xf32> to vector<2x64xf32>
    %36 = vector.extract_strided_slice %32 {offsets = [0, 0], sizes = [2, 64], strides = [1, 1]} : vector<2x96xf32> to vector<2x64xf32>
    %37 = arith.addf %35, %36 : vector<2x64xf32>
    %38 = arith.negf %37 : vector<2x64xf32>
    %39 = math.exp %38 : vector<2x64xf32>
    %cst_11 = arith.constant 1.000000e+00 : f32
    %40 = vector.broadcast %cst_11 : f32 to vector<2x64xf32>
    %41 = arith.addf %40, %39 : vector<2x64xf32>
    %42 = arith.divf %40, %41 : vector<2x64xf32>
    %43 = vector.extract_strided_slice %42 {offsets = [0, 0], sizes = [2, 32], strides = [1, 1]} : vector<2x64xf32> to vector<2x32xf32>
    %44 = vector.extract_strided_slice %42 {offsets = [0, 32], sizes = [2, 32], strides = [1, 1]} : vector<2x64xf32> to vector<2x32xf32>
    %45 = vector.extract_strided_slice %33 {offsets = [0, 64], sizes = [2, 32], strides = [1, 1]} : vector<2x96xf32> to vector<2x32xf32>
    %46 = vector.extract_strided_slice %32 {offsets = [0, 64], sizes = [2, 32], strides = [1, 1]} : vector<2x96xf32> to vector<2x32xf32>
    %47 = vector.broadcast %34 : vector<1x32xf32> to vector<2x32xf32>
    %48 = arith.addf %46, %47 : vector<2x32xf32>
    %49 = arith.mulf %43, %48 : vector<2x32xf32>
    %50 = arith.addf %45, %49 : vector<2x32xf32>
    %51 = math.tanh %50 : vector<2x32xf32>
    %cst_12 = arith.constant 1.000000e+00 : f32
    %52 = vector.broadcast %cst_12 : f32 to vector<2x32xf32>
    %53 = arith.subf %52, %44 : vector<2x32xf32>
    %54 = arith.mulf %53, %51 : vector<2x32xf32>
    %55 = arith.mulf %44, %29 : vector<2x32xf32>
    %56 = arith.addf %54, %55 : vector<2x32xf32>
    %cst_13 = arith.constant 0.000000e+00 : f32
    %57 = vector.broadcast %cst_13 : f32 to vector<2x32xf32>
    %58 = arith.select %14, %56, %57 : vector<2x32xi1>, vector<2x32xf32>
    %59 = arith.select %14, %56, %29 : vector<2x32xi1>, vector<2x32xf32>
    %60 = tpu.concatenate %59, %29, %58 in 1 : vector<2x32xf32>, vector<2x32xf32>, vector<2x32xf32> -> vector<2x96xf32>
    %cst_14 = arith.constant dense<0.000000e+00> : vector<2x384xf32>
    %61 = tpu.matmul %60, %8, %cst_14 {dimension_numbers = #tpu.dot_dimension_numbers<[1], [0], [0], [1], [0, 0, 1, 1], [], []>} : vector<2x96xf32>, vector<96x384xf32>, vector<2x384xf32> -> vector<2x384xf32>
    %62 = vector.extract_strided_slice %61 {offsets = [0, 0], sizes = [2, 96], strides = [1, 1]} : vector<2x384xf32> to vector<2x96xf32>
    %63 = vector.extract_strided_slice %7 {offsets = [2, 0], sizes = [2, 96], strides = [1, 1]} : vector<16x96xf32> to vector<2x96xf32>
    %64 = vector.extract_strided_slice %9 {offsets = [0, 96], sizes = [1, 32], strides = [1, 1]} : vector<2x128xf32> to vector<1x32xf32>
    %65 = vector.extract_strided_slice %63 {offsets = [0, 0], sizes = [2, 64], strides = [1, 1]} : vector<2x96xf32> to vector<2x64xf32>
    %66 = vector.extract_strided_slice %62 {offsets = [0, 0], sizes = [2, 64], strides = [1, 1]} : vector<2x96xf32> to vector<2x64xf32>
    %67 = arith.addf %65, %66 : vector<2x64xf32>
    %68 = arith.negf %67 : vector<2x64xf32>
    %69 = math.exp %68 : vector<2x64xf32>
    %cst_15 = arith.constant 1.000000e+00 : f32
    %70 = vector.broadcast %cst_15 : f32 to vector<2x64xf32>
    %71 = arith.addf %70, %69 : vector<2x64xf32>
    %72 = arith.divf %70, %71 : vector<2x64xf32>
    %73 = vector.extract_strided_slice %72 {offsets = [0, 0], sizes = [2, 32], strides = [1, 1]} : vector<2x64xf32> to vector<2x32xf32>
    %74 = vector.extract_strided_slice %72 {offsets = [0, 32], sizes = [2, 32], strides = [1, 1]} : vector<2x64xf32> to vector<2x32xf32>
    %75 = vector.extract_strided_slice %63 {offsets = [0, 64], sizes = [2, 32], strides = [1, 1]} : vector<2x96xf32> to vector<2x32xf32>
    %76 = vector.extract_strided_slice %62 {offsets = [0, 64], sizes = [2, 32], strides = [1, 1]} : vector<2x96xf32> to vector<2x32xf32>
    %77 = vector.broadcast %64 : vector<1x32xf32> to vector<2x32xf32>
    %78 = arith.addf %76, %77 : vector<2x32xf32>
    %79 = arith.mulf %73, %78 : vector<2x32xf32>
    %80 = arith.addf %75, %79 : vector<2x32xf32>
    %81 = math.tanh %80 : vector<2x32xf32>
    %cst_16 = arith.constant 1.000000e+00 : f32
    %82 = vector.broadcast %cst_16 : f32 to vector<2x32xf32>
    %83 = arith.subf %82, %74 : vector<2x32xf32>
    %84 = arith.mulf %83, %81 : vector<2x32xf32>
    %85 = arith.mulf %74, %59 : vector<2x32xf32>
    %86 = arith.addf %84, %85 : vector<2x32xf32>
    %cst_17 = arith.constant 0.000000e+00 : f32
    %87 = vector.broadcast %cst_17 : f32 to vector<2x32xf32>
    %88 = arith.select %16, %86, %87 : vector<2x32xi1>, vector<2x32xf32>
    %89 = arith.select %16, %86, %59 : vector<2x32xi1>, vector<2x32xf32>
    %90 = vector.extract_strided_slice %61 {offsets = [0, 128], sizes = [2, 96], strides = [1, 1]} : vector<2x384xf32> to vector<2x96xf32>
    %91 = vector.extract_strided_slice %61 {offsets = [0, 256], sizes = [2, 96], strides = [1, 1]} : vector<2x384xf32> to vector<2x96xf32>
    %92 = vector.extract_strided_slice %9 {offsets = [1, 0], sizes = [1, 96], strides = [1, 1]} : vector<2x128xf32> to vector<1x96xf32>
    %93 = vector.broadcast %92 : vector<1x96xf32> to vector<2x96xf32>
    %94 = arith.addf %91, %93 : vector<2x96xf32>
    %95 = vector.extract_strided_slice %9 {offsets = [1, 96], sizes = [1, 32], strides = [1, 1]} : vector<2x128xf32> to vector<1x32xf32>
    %96 = vector.extract_strided_slice %94 {offsets = [0, 0], sizes = [2, 64], strides = [1, 1]} : vector<2x96xf32> to vector<2x64xf32>
    %97 = vector.extract_strided_slice %90 {offsets = [0, 0], sizes = [2, 64], strides = [1, 1]} : vector<2x96xf32> to vector<2x64xf32>
    %98 = arith.addf %96, %97 : vector<2x64xf32>
    %99 = arith.negf %98 : vector<2x64xf32>
    %100 = math.exp %99 : vector<2x64xf32>
    %cst_18 = arith.constant 1.000000e+00 : f32
    %101 = vector.broadcast %cst_18 : f32 to vector<2x64xf32>
    %102 = arith.addf %101, %100 : vector<2x64xf32>
    %103 = arith.divf %101, %102 : vector<2x64xf32>
    %104 = vector.extract_strided_slice %103 {offsets = [0, 0], sizes = [2, 32], strides = [1, 1]} : vector<2x64xf32> to vector<2x32xf32>
    %105 = vector.extract_strided_slice %103 {offsets = [0, 32], sizes = [2, 32], strides = [1, 1]} : vector<2x64xf32> to vector<2x32xf32>
    %106 = vector.extract_strided_slice %94 {offsets = [0, 64], sizes = [2, 32], strides = [1, 1]} : vector<2x96xf32> to vector<2x32xf32>
    %107 = vector.extract_strided_slice %90 {offsets = [0, 64], sizes = [2, 32], strides = [1, 1]} : vector<2x96xf32> to vector<2x32xf32>
    %108 = vector.broadcast %95 : vector<1x32xf32> to vector<2x32xf32>
    %109 = arith.addf %107, %108 : vector<2x32xf32>
    %110 = arith.mulf %104, %109 : vector<2x32xf32>
    %111 = arith.addf %106, %110 : vector<2x32xf32>
    %112 = math.tanh %111 : vector<2x32xf32>
    %cst_19 = arith.constant 1.000000e+00 : f32
    %113 = vector.broadcast %cst_19 : f32 to vector<2x32xf32>
    %114 = arith.subf %113, %105 : vector<2x32xf32>
    %115 = arith.mulf %114, %112 : vector<2x32xf32>
    %116 = arith.mulf %105, %29 : vector<2x32xf32>
    %117 = arith.addf %115, %116 : vector<2x32xf32>
    %cst_20 = arith.constant 0.000000e+00 : f32
    %118 = vector.broadcast %cst_20 : f32 to vector<2x32xf32>
    %119 = arith.select %14, %117, %118 : vector<2x32xi1>, vector<2x32xf32>
    %120 = arith.select %14, %117, %29 : vector<2x32xi1>, vector<2x32xf32>
    %121 = tpu.concatenate %89, %120, %88 in 1 : vector<2x32xf32>, vector<2x32xf32>, vector<2x32xf32> -> vector<2x96xf32>
    %cst_21 = arith.constant dense<0.000000e+00> : vector<2x384xf32>
    %122 = tpu.matmul %121, %8, %cst_21 {dimension_numbers = #tpu.dot_dimension_numbers<[1], [0], [0], [1], [0, 0, 1, 1], [], []>} : vector<2x96xf32>, vector<96x384xf32>, vector<2x384xf32> -> vector<2x384xf32>
    %123 = vector.extract_strided_slice %122 {offsets = [0, 0], sizes = [2, 96], strides = [1, 1]} : vector<2x384xf32> to vector<2x96xf32>
    %124 = vector.extract_strided_slice %7 {offsets = [4, 0], sizes = [2, 96], strides = [1, 1]} : vector<16x96xf32> to vector<2x96xf32>
    %125 = vector.extract_strided_slice %9 {offsets = [0, 96], sizes = [1, 32], strides = [1, 1]} : vector<2x128xf32> to vector<1x32xf32>
    %126 = vector.extract_strided_slice %124 {offsets = [0, 0], sizes = [2, 64], strides = [1, 1]} : vector<2x96xf32> to vector<2x64xf32>
    %127 = vector.extract_strided_slice %123 {offsets = [0, 0], sizes = [2, 64], strides = [1, 1]} : vector<2x96xf32> to vector<2x64xf32>
    %128 = arith.addf %126, %127 : vector<2x64xf32>
    %129 = arith.negf %128 : vector<2x64xf32>
    %130 = math.exp %129 : vector<2x64xf32>
    %cst_22 = arith.constant 1.000000e+00 : f32
    %131 = vector.broadcast %cst_22 : f32 to vector<2x64xf32>
    %132 = arith.addf %131, %130 : vector<2x64xf32>
    %133 = arith.divf %131, %132 : vector<2x64xf32>
    %134 = vector.extract_strided_slice %133 {offsets = [0, 0], sizes = [2, 32], strides = [1, 1]} : vector<2x64xf32> to vector<2x32xf32>
    %135 = vector.extract_strided_slice %133 {offsets = [0, 32], sizes = [2, 32], strides = [1, 1]} : vector<2x64xf32> to vector<2x32xf32>
    %136 = vector.extract_strided_slice %124 {offsets = [0, 64], sizes = [2, 32], strides = [1, 1]} : vector<2x96xf32> to vector<2x32xf32>
    %137 = vector.extract_strided_slice %123 {offsets = [0, 64], sizes = [2, 32], strides = [1, 1]} : vector<2x96xf32> to vector<2x32xf32>
    %138 = vector.broadcast %125 : vector<1x32xf32> to vector<2x32xf32>
    %139 = arith.addf %137, %138 : vector<2x32xf32>
    %140 = arith.mulf %134, %139 : vector<2x32xf32>
    %141 = arith.addf %136, %140 : vector<2x32xf32>
    %142 = math.tanh %141 : vector<2x32xf32>
    %cst_23 = arith.constant 1.000000e+00 : f32
    %143 = vector.broadcast %cst_23 : f32 to vector<2x32xf32>
    %144 = arith.subf %143, %135 : vector<2x32xf32>
    %145 = arith.mulf %144, %142 : vector<2x32xf32>
    %146 = arith.mulf %135, %89 : vector<2x32xf32>
    %147 = arith.addf %145, %146 : vector<2x32xf32>
    %cst_24 = arith.constant 0.000000e+00 : f32
    %148 = vector.broadcast %cst_24 : f32 to vector<2x32xf32>
    %149 = arith.select %18, %147, %148 : vector<2x32xi1>, vector<2x32xf32>
    %150 = arith.select %18, %147, %89 : vector<2x32xi1>, vector<2x32xf32>
    %151 = vector.extract_strided_slice %122 {offsets = [0, 128], sizes = [2, 96], strides = [1, 1]} : vector<2x384xf32> to vector<2x96xf32>
    %152 = vector.extract_strided_slice %122 {offsets = [0, 256], sizes = [2, 96], strides = [1, 1]} : vector<2x384xf32> to vector<2x96xf32>
    %153 = vector.extract_strided_slice %9 {offsets = [1, 0], sizes = [1, 96], strides = [1, 1]} : vector<2x128xf32> to vector<1x96xf32>
    %154 = vector.broadcast %153 : vector<1x96xf32> to vector<2x96xf32>
    %155 = arith.addf %152, %154 : vector<2x96xf32>
    %156 = vector.extract_strided_slice %9 {offsets = [1, 96], sizes = [1, 32], strides = [1, 1]} : vector<2x128xf32> to vector<1x32xf32>
    %157 = vector.extract_strided_slice %155 {offsets = [0, 0], sizes = [2, 64], strides = [1, 1]} : vector<2x96xf32> to vector<2x64xf32>
    %158 = vector.extract_strided_slice %151 {offsets = [0, 0], sizes = [2, 64], strides = [1, 1]} : vector<2x96xf32> to vector<2x64xf32>
    %159 = arith.addf %157, %158 : vector<2x64xf32>
    %160 = arith.negf %159 : vector<2x64xf32>
    %161 = math.exp %160 : vector<2x64xf32>
    %cst_25 = arith.constant 1.000000e+00 : f32
    %162 = vector.broadcast %cst_25 : f32 to vector<2x64xf32>
    %163 = arith.addf %162, %161 : vector<2x64xf32>
    %164 = arith.divf %162, %163 : vector<2x64xf32>
    %165 = vector.extract_strided_slice %164 {offsets = [0, 0], sizes = [2, 32], strides = [1, 1]} : vector<2x64xf32> to vector<2x32xf32>
    %166 = vector.extract_strided_slice %164 {offsets = [0, 32], sizes = [2, 32], strides = [1, 1]} : vector<2x64xf32> to vector<2x32xf32>
    %167 = vector.extract_strided_slice %155 {offsets = [0, 64], sizes = [2, 32], strides = [1, 1]} : vector<2x96xf32> to vector<2x32xf32>
    %168 = vector.extract_strided_slice %151 {offsets = [0, 64], sizes = [2, 32], strides = [1, 1]} : vector<2x96xf32> to vector<2x32xf32>
    %169 = vector.broadcast %156 : vector<1x32xf32> to vector<2x32xf32>
    %170 = arith.addf %168, %169 : vector<2x32xf32>
    %171 = arith.mulf %165, %170 : vector<2x32xf32>
    %172 = arith.addf %167, %171 : vector<2x32xf32>
    %173 = math.tanh %172 : vector<2x32xf32>
    %cst_26 = arith.constant 1.000000e+00 : f32
    %174 = vector.broadcast %cst_26 : f32 to vector<2x32xf32>
    %175 = arith.subf %174, %166 : vector<2x32xf32>
    %176 = arith.mulf %175, %173 : vector<2x32xf32>
    %177 = arith.mulf %166, %120 : vector<2x32xf32>
    %178 = arith.addf %176, %177 : vector<2x32xf32>
    %cst_27 = arith.constant 0.000000e+00 : f32
    %179 = vector.broadcast %cst_27 : f32 to vector<2x32xf32>
    %180 = arith.select %16, %178, %179 : vector<2x32xi1>, vector<2x32xf32>
    %181 = arith.select %16, %178, %120 : vector<2x32xi1>, vector<2x32xf32>
    %182 = tpu.concatenate %150, %181, %149 in 1 : vector<2x32xf32>, vector<2x32xf32>, vector<2x32xf32> -> vector<2x96xf32>
    %cst_28 = arith.constant dense<0.000000e+00> : vector<2x384xf32>
    %183 = tpu.matmul %182, %8, %cst_28 {dimension_numbers = #tpu.dot_dimension_numbers<[1], [0], [0], [1], [0, 0, 1, 1], [], []>} : vector<2x96xf32>, vector<96x384xf32>, vector<2x384xf32> -> vector<2x384xf32>
    %184 = vector.extract_strided_slice %183 {offsets = [0, 0], sizes = [2, 96], strides = [1, 1]} : vector<2x384xf32> to vector<2x96xf32>
    %185 = vector.extract_strided_slice %7 {offsets = [6, 0], sizes = [2, 96], strides = [1, 1]} : vector<16x96xf32> to vector<2x96xf32>
    %186 = vector.extract_strided_slice %9 {offsets = [0, 96], sizes = [1, 32], strides = [1, 1]} : vector<2x128xf32> to vector<1x32xf32>
    %187 = vector.extract_strided_slice %185 {offsets = [0, 0], sizes = [2, 64], strides = [1, 1]} : vector<2x96xf32> to vector<2x64xf32>
    %188 = vector.extract_strided_slice %184 {offsets = [0, 0], sizes = [2, 64], strides = [1, 1]} : vector<2x96xf32> to vector<2x64xf32>
    %189 = arith.addf %187, %188 : vector<2x64xf32>
    %190 = arith.negf %189 : vector<2x64xf32>
    %191 = math.exp %190 : vector<2x64xf32>
    %cst_29 = arith.constant 1.000000e+00 : f32
    %192 = vector.broadcast %cst_29 : f32 to vector<2x64xf32>
    %193 = arith.addf %192, %191 : vector<2x64xf32>
    %194 = arith.divf %192, %193 : vector<2x64xf32>
    %195 = vector.extract_strided_slice %194 {offsets = [0, 0], sizes = [2, 32], strides = [1, 1]} : vector<2x64xf32> to vector<2x32xf32>
    %196 = vector.extract_strided_slice %194 {offsets = [0, 32], sizes = [2, 32], strides = [1, 1]} : vector<2x64xf32> to vector<2x32xf32>
    %197 = vector.extract_strided_slice %185 {offsets = [0, 64], sizes = [2, 32], strides = [1, 1]} : vector<2x96xf32> to vector<2x32xf32>
    %198 = vector.extract_strided_slice %184 {offsets = [0, 64], sizes = [2, 32], strides = [1, 1]} : vector<2x96xf32> to vector<2x32xf32>
    %199 = vector.broadcast %186 : vector<1x32xf32> to vector<2x32xf32>
    %200 = arith.addf %198, %199 : vector<2x32xf32>
    %201 = arith.mulf %195, %200 : vector<2x32xf32>
    %202 = arith.addf %197, %201 : vector<2x32xf32>
    %203 = math.tanh %202 : vector<2x32xf32>
    %cst_30 = arith.constant 1.000000e+00 : f32
    %204 = vector.broadcast %cst_30 : f32 to vector<2x32xf32>
    %205 = arith.subf %204, %196 : vector<2x32xf32>
    %206 = arith.mulf %205, %203 : vector<2x32xf32>
    %207 = arith.mulf %196, %150 : vector<2x32xf32>
    %208 = arith.addf %206, %207 : vector<2x32xf32>
    %cst_31 = arith.constant 0.000000e+00 : f32
    %209 = vector.broadcast %cst_31 : f32 to vector<2x32xf32>
    %210 = arith.select %20, %208, %209 : vector<2x32xi1>, vector<2x32xf32>
    %211 = arith.select %20, %208, %150 : vector<2x32xi1>, vector<2x32xf32>
    %212 = vector.extract_strided_slice %183 {offsets = [0, 128], sizes = [2, 96], strides = [1, 1]} : vector<2x384xf32> to vector<2x96xf32>
    %213 = vector.extract_strided_slice %183 {offsets = [0, 256], sizes = [2, 96], strides = [1, 1]} : vector<2x384xf32> to vector<2x96xf32>
    %214 = vector.extract_strided_slice %9 {offsets = [1, 0], sizes = [1, 96], strides = [1, 1]} : vector<2x128xf32> to vector<1x96xf32>
    %215 = vector.broadcast %214 : vector<1x96xf32> to vector<2x96xf32>
    %216 = arith.addf %213, %215 : vector<2x96xf32>
    %217 = vector.extract_strided_slice %9 {offsets = [1, 96], sizes = [1, 32], strides = [1, 1]} : vector<2x128xf32> to vector<1x32xf32>
    %218 = vector.extract_strided_slice %216 {offsets = [0, 0], sizes = [2, 64], strides = [1, 1]} : vector<2x96xf32> to vector<2x64xf32>
    %219 = vector.extract_strided_slice %212 {offsets = [0, 0], sizes = [2, 64], strides = [1, 1]} : vector<2x96xf32> to vector<2x64xf32>
    %220 = arith.addf %218, %219 : vector<2x64xf32>
    %221 = arith.negf %220 : vector<2x64xf32>
    %222 = math.exp %221 : vector<2x64xf32>
    %cst_32 = arith.constant 1.000000e+00 : f32
    %223 = vector.broadcast %cst_32 : f32 to vector<2x64xf32>
    %224 = arith.addf %223, %222 : vector<2x64xf32>
    %225 = arith.divf %223, %224 : vector<2x64xf32>
    %226 = vector.extract_strided_slice %225 {offsets = [0, 0], sizes = [2, 32], strides = [1, 1]} : vector<2x64xf32> to vector<2x32xf32>
    %227 = vector.extract_strided_slice %225 {offsets = [0, 32], sizes = [2, 32], strides = [1, 1]} : vector<2x64xf32> to vector<2x32xf32>
    %228 = vector.extract_strided_slice %216 {offsets = [0, 64], sizes = [2, 32], strides = [1, 1]} : vector<2x96xf32> to vector<2x32xf32>
    %229 = vector.extract_strided_slice %212 {offsets = [0, 64], sizes = [2, 32], strides = [1, 1]} : vector<2x96xf32> to vector<2x32xf32>
    %230 = vector.broadcast %217 : vector<1x32xf32> to vector<2x32xf32>
    %231 = arith.addf %229, %230 : vector<2x32xf32>
    %232 = arith.mulf %226, %231 : vector<2x32xf32>
    %233 = arith.addf %228, %232 : vector<2x32xf32>
    %234 = math.tanh %233 : vector<2x32xf32>
    %cst_33 = arith.constant 1.000000e+00 : f32
    %235 = vector.broadcast %cst_33 : f32 to vector<2x32xf32>
    %236 = arith.subf %235, %227 : vector<2x32xf32>
    %237 = arith.mulf %236, %234 : vector<2x32xf32>
    %238 = arith.mulf %227, %181 : vector<2x32xf32>
    %239 = arith.addf %237, %238 : vector<2x32xf32>
    %cst_34 = arith.constant 0.000000e+00 : f32
    %240 = vector.broadcast %cst_34 : f32 to vector<2x32xf32>
    %241 = arith.select %18, %239, %240 : vector<2x32xi1>, vector<2x32xf32>
    %242 = arith.select %18, %239, %181 : vector<2x32xi1>, vector<2x32xf32>
    %243 = tpu.concatenate %211, %242, %210 in 1 : vector<2x32xf32>, vector<2x32xf32>, vector<2x32xf32> -> vector<2x96xf32>
    %cst_35 = arith.constant dense<0.000000e+00> : vector<2x384xf32>
    %244 = tpu.matmul %243, %8, %cst_35 {dimension_numbers = #tpu.dot_dimension_numbers<[1], [0], [0], [1], [0, 0, 1, 1], [], []>} : vector<2x96xf32>, vector<96x384xf32>, vector<2x384xf32> -> vector<2x384xf32>
    %245 = vector.extract_strided_slice %244 {offsets = [0, 0], sizes = [2, 96], strides = [1, 1]} : vector<2x384xf32> to vector<2x96xf32>
    %246 = vector.extract_strided_slice %7 {offsets = [8, 0], sizes = [2, 96], strides = [1, 1]} : vector<16x96xf32> to vector<2x96xf32>
    %247 = vector.extract_strided_slice %9 {offsets = [0, 96], sizes = [1, 32], strides = [1, 1]} : vector<2x128xf32> to vector<1x32xf32>
    %248 = vector.extract_strided_slice %246 {offsets = [0, 0], sizes = [2, 64], strides = [1, 1]} : vector<2x96xf32> to vector<2x64xf32>
    %249 = vector.extract_strided_slice %245 {offsets = [0, 0], sizes = [2, 64], strides = [1, 1]} : vector<2x96xf32> to vector<2x64xf32>
    %250 = arith.addf %248, %249 : vector<2x64xf32>
    %251 = arith.negf %250 : vector<2x64xf32>
    %252 = math.exp %251 : vector<2x64xf32>
    %cst_36 = arith.constant 1.000000e+00 : f32
    %253 = vector.broadcast %cst_36 : f32 to vector<2x64xf32>
    %254 = arith.addf %253, %252 : vector<2x64xf32>
    %255 = arith.divf %253, %254 : vector<2x64xf32>
    %256 = vector.extract_strided_slice %255 {offsets = [0, 0], sizes = [2, 32], strides = [1, 1]} : vector<2x64xf32> to vector<2x32xf32>
    %257 = vector.extract_strided_slice %255 {offsets = [0, 32], sizes = [2, 32], strides = [1, 1]} : vector<2x64xf32> to vector<2x32xf32>
    %258 = vector.extract_strided_slice %246 {offsets = [0, 64], sizes = [2, 32], strides = [1, 1]} : vector<2x96xf32> to vector<2x32xf32>
    %259 = vector.extract_strided_slice %245 {offsets = [0, 64], sizes = [2, 32], strides = [1, 1]} : vector<2x96xf32> to vector<2x32xf32>
    %260 = vector.broadcast %247 : vector<1x32xf32> to vector<2x32xf32>
    %261 = arith.addf %259, %260 : vector<2x32xf32>
    %262 = arith.mulf %256, %261 : vector<2x32xf32>
    %263 = arith.addf %258, %262 : vector<2x32xf32>
    %264 = math.tanh %263 : vector<2x32xf32>
    %cst_37 = arith.constant 1.000000e+00 : f32
    %265 = vector.broadcast %cst_37 : f32 to vector<2x32xf32>
    %266 = arith.subf %265, %257 : vector<2x32xf32>
    %267 = arith.mulf %266, %264 : vector<2x32xf32>
    %268 = arith.mulf %257, %211 : vector<2x32xf32>
    %269 = arith.addf %267, %268 : vector<2x32xf32>
    %cst_38 = arith.constant 0.000000e+00 : f32
    %270 = vector.broadcast %cst_38 : f32 to vector<2x32xf32>
    %271 = arith.select %22, %269, %270 : vector<2x32xi1>, vector<2x32xf32>
    %272 = arith.select %22, %269, %211 : vector<2x32xi1>, vector<2x32xf32>
    %273 = vector.extract_strided_slice %244 {offsets = [0, 128], sizes = [2, 96], strides = [1, 1]} : vector<2x384xf32> to vector<2x96xf32>
    %274 = vector.extract_strided_slice %244 {offsets = [0, 256], sizes = [2, 96], strides = [1, 1]} : vector<2x384xf32> to vector<2x96xf32>
    %275 = vector.extract_strided_slice %9 {offsets = [1, 0], sizes = [1, 96], strides = [1, 1]} : vector<2x128xf32> to vector<1x96xf32>
    %276 = vector.broadcast %275 : vector<1x96xf32> to vector<2x96xf32>
    %277 = arith.addf %274, %276 : vector<2x96xf32>
    %278 = vector.extract_strided_slice %9 {offsets = [1, 96], sizes = [1, 32], strides = [1, 1]} : vector<2x128xf32> to vector<1x32xf32>
    %279 = vector.extract_strided_slice %277 {offsets = [0, 0], sizes = [2, 64], strides = [1, 1]} : vector<2x96xf32> to vector<2x64xf32>
    %280 = vector.extract_strided_slice %273 {offsets = [0, 0], sizes = [2, 64], strides = [1, 1]} : vector<2x96xf32> to vector<2x64xf32>
    %281 = arith.addf %279, %280 : vector<2x64xf32>
    %282 = arith.negf %281 : vector<2x64xf32>
    %283 = math.exp %282 : vector<2x64xf32>
    %cst_39 = arith.constant 1.000000e+00 : f32
    %284 = vector.broadcast %cst_39 : f32 to vector<2x64xf32>
    %285 = arith.addf %284, %283 : vector<2x64xf32>
    %286 = arith.divf %284, %285 : vector<2x64xf32>
    %287 = vector.extract_strided_slice %286 {offsets = [0, 0], sizes = [2, 32], strides = [1, 1]} : vector<2x64xf32> to vector<2x32xf32>
    %288 = vector.extract_strided_slice %286 {offsets = [0, 32], sizes = [2, 32], strides = [1, 1]} : vector<2x64xf32> to vector<2x32xf32>
    %289 = vector.extract_strided_slice %277 {offsets = [0, 64], sizes = [2, 32], strides = [1, 1]} : vector<2x96xf32> to vector<2x32xf32>
    %290 = vector.extract_strided_slice %273 {offsets = [0, 64], sizes = [2, 32], strides = [1, 1]} : vector<2x96xf32> to vector<2x32xf32>
    %291 = vector.broadcast %278 : vector<1x32xf32> to vector<2x32xf32>
    %292 = arith.addf %290, %291 : vector<2x32xf32>
    %293 = arith.mulf %287, %292 : vector<2x32xf32>
    %294 = arith.addf %289, %293 : vector<2x32xf32>
    %295 = math.tanh %294 : vector<2x32xf32>
    %cst_40 = arith.constant 1.000000e+00 : f32
    %296 = vector.broadcast %cst_40 : f32 to vector<2x32xf32>
    %297 = arith.subf %296, %288 : vector<2x32xf32>
    %298 = arith.mulf %297, %295 : vector<2x32xf32>
    %299 = arith.mulf %288, %242 : vector<2x32xf32>
    %300 = arith.addf %298, %299 : vector<2x32xf32>
    %cst_41 = arith.constant 0.000000e+00 : f32
    %301 = vector.broadcast %cst_41 : f32 to vector<2x32xf32>
    %302 = arith.select %20, %300, %301 : vector<2x32xi1>, vector<2x32xf32>
    %303 = arith.select %20, %300, %242 : vector<2x32xi1>, vector<2x32xf32>
    %304 = tpu.concatenate %272, %303, %271 in 1 : vector<2x32xf32>, vector<2x32xf32>, vector<2x32xf32> -> vector<2x96xf32>
    %cst_42 = arith.constant dense<0.000000e+00> : vector<2x384xf32>
    %305 = tpu.matmul %304, %8, %cst_42 {dimension_numbers = #tpu.dot_dimension_numbers<[1], [0], [0], [1], [0, 0, 1, 1], [], []>} : vector<2x96xf32>, vector<96x384xf32>, vector<2x384xf32> -> vector<2x384xf32>
    %306 = vector.extract_strided_slice %305 {offsets = [0, 0], sizes = [2, 96], strides = [1, 1]} : vector<2x384xf32> to vector<2x96xf32>
    %307 = vector.extract_strided_slice %7 {offsets = [10, 0], sizes = [2, 96], strides = [1, 1]} : vector<16x96xf32> to vector<2x96xf32>
    %308 = vector.extract_strided_slice %9 {offsets = [0, 96], sizes = [1, 32], strides = [1, 1]} : vector<2x128xf32> to vector<1x32xf32>
    %309 = vector.extract_strided_slice %307 {offsets = [0, 0], sizes = [2, 64], strides = [1, 1]} : vector<2x96xf32> to vector<2x64xf32>
    %310 = vector.extract_strided_slice %306 {offsets = [0, 0], sizes = [2, 64], strides = [1, 1]} : vector<2x96xf32> to vector<2x64xf32>
    %311 = arith.addf %309, %310 : vector<2x64xf32>
    %312 = arith.negf %311 : vector<2x64xf32>
    %313 = math.exp %312 : vector<2x64xf32>
    %cst_43 = arith.constant 1.000000e+00 : f32
    %314 = vector.broadcast %cst_43 : f32 to vector<2x64xf32>
    %315 = arith.addf %314, %313 : vector<2x64xf32>
    %316 = arith.divf %314, %315 : vector<2x64xf32>
    %317 = vector.extract_strided_slice %316 {offsets = [0, 0], sizes = [2, 32], strides = [1, 1]} : vector<2x64xf32> to vector<2x32xf32>
    %318 = vector.extract_strided_slice %316 {offsets = [0, 32], sizes = [2, 32], strides = [1, 1]} : vector<2x64xf32> to vector<2x32xf32>
    %319 = vector.extract_strided_slice %307 {offsets = [0, 64], sizes = [2, 32], strides = [1, 1]} : vector<2x96xf32> to vector<2x32xf32>
    %320 = vector.extract_strided_slice %306 {offsets = [0, 64], sizes = [2, 32], strides = [1, 1]} : vector<2x96xf32> to vector<2x32xf32>
    %321 = vector.broadcast %308 : vector<1x32xf32> to vector<2x32xf32>
    %322 = arith.addf %320, %321 : vector<2x32xf32>
    %323 = arith.mulf %317, %322 : vector<2x32xf32>
    %324 = arith.addf %319, %323 : vector<2x32xf32>
    %325 = math.tanh %324 : vector<2x32xf32>
    %cst_44 = arith.constant 1.000000e+00 : f32
    %326 = vector.broadcast %cst_44 : f32 to vector<2x32xf32>
    %327 = arith.subf %326, %318 : vector<2x32xf32>
    %328 = arith.mulf %327, %325 : vector<2x32xf32>
    %329 = arith.mulf %318, %272 : vector<2x32xf32>
    %330 = arith.addf %328, %329 : vector<2x32xf32>
    %cst_45 = arith.constant 0.000000e+00 : f32
    %331 = vector.broadcast %cst_45 : f32 to vector<2x32xf32>
    %332 = arith.select %24, %330, %331 : vector<2x32xi1>, vector<2x32xf32>
    %333 = arith.select %24, %330, %272 : vector<2x32xi1>, vector<2x32xf32>
    %334 = vector.extract_strided_slice %305 {offsets = [0, 128], sizes = [2, 96], strides = [1, 1]} : vector<2x384xf32> to vector<2x96xf32>
    %335 = vector.extract_strided_slice %305 {offsets = [0, 256], sizes = [2, 96], strides = [1, 1]} : vector<2x384xf32> to vector<2x96xf32>
    %336 = vector.extract_strided_slice %9 {offsets = [1, 0], sizes = [1, 96], strides = [1, 1]} : vector<2x128xf32> to vector<1x96xf32>
    %337 = vector.broadcast %336 : vector<1x96xf32> to vector<2x96xf32>
    %338 = arith.addf %335, %337 : vector<2x96xf32>
    %339 = vector.extract_strided_slice %9 {offsets = [1, 96], sizes = [1, 32], strides = [1, 1]} : vector<2x128xf32> to vector<1x32xf32>
    %340 = vector.extract_strided_slice %338 {offsets = [0, 0], sizes = [2, 64], strides = [1, 1]} : vector<2x96xf32> to vector<2x64xf32>
    %341 = vector.extract_strided_slice %334 {offsets = [0, 0], sizes = [2, 64], strides = [1, 1]} : vector<2x96xf32> to vector<2x64xf32>
    %342 = arith.addf %340, %341 : vector<2x64xf32>
    %343 = arith.negf %342 : vector<2x64xf32>
    %344 = math.exp %343 : vector<2x64xf32>
    %cst_46 = arith.constant 1.000000e+00 : f32
    %345 = vector.broadcast %cst_46 : f32 to vector<2x64xf32>
    %346 = arith.addf %345, %344 : vector<2x64xf32>
    %347 = arith.divf %345, %346 : vector<2x64xf32>
    %348 = vector.extract_strided_slice %347 {offsets = [0, 0], sizes = [2, 32], strides = [1, 1]} : vector<2x64xf32> to vector<2x32xf32>
    %349 = vector.extract_strided_slice %347 {offsets = [0, 32], sizes = [2, 32], strides = [1, 1]} : vector<2x64xf32> to vector<2x32xf32>
    %350 = vector.extract_strided_slice %338 {offsets = [0, 64], sizes = [2, 32], strides = [1, 1]} : vector<2x96xf32> to vector<2x32xf32>
    %351 = vector.extract_strided_slice %334 {offsets = [0, 64], sizes = [2, 32], strides = [1, 1]} : vector<2x96xf32> to vector<2x32xf32>
    %352 = vector.broadcast %339 : vector<1x32xf32> to vector<2x32xf32>
    %353 = arith.addf %351, %352 : vector<2x32xf32>
    %354 = arith.mulf %348, %353 : vector<2x32xf32>
    %355 = arith.addf %350, %354 : vector<2x32xf32>
    %356 = math.tanh %355 : vector<2x32xf32>
    %cst_47 = arith.constant 1.000000e+00 : f32
    %357 = vector.broadcast %cst_47 : f32 to vector<2x32xf32>
    %358 = arith.subf %357, %349 : vector<2x32xf32>
    %359 = arith.mulf %358, %356 : vector<2x32xf32>
    %360 = arith.mulf %349, %303 : vector<2x32xf32>
    %361 = arith.addf %359, %360 : vector<2x32xf32>
    %cst_48 = arith.constant 0.000000e+00 : f32
    %362 = vector.broadcast %cst_48 : f32 to vector<2x32xf32>
    %363 = arith.select %22, %361, %362 : vector<2x32xi1>, vector<2x32xf32>
    %364 = arith.select %22, %361, %303 : vector<2x32xi1>, vector<2x32xf32>
    %365 = tpu.concatenate %333, %364, %332 in 1 : vector<2x32xf32>, vector<2x32xf32>, vector<2x32xf32> -> vector<2x96xf32>
    %cst_49 = arith.constant dense<0.000000e+00> : vector<2x384xf32>
    %366 = tpu.matmul %365, %8, %cst_49 {dimension_numbers = #tpu.dot_dimension_numbers<[1], [0], [0], [1], [0, 0, 1, 1], [], []>} : vector<2x96xf32>, vector<96x384xf32>, vector<2x384xf32> -> vector<2x384xf32>
    %367 = vector.extract_strided_slice %366 {offsets = [0, 0], sizes = [2, 96], strides = [1, 1]} : vector<2x384xf32> to vector<2x96xf32>
    %368 = vector.extract_strided_slice %7 {offsets = [12, 0], sizes = [2, 96], strides = [1, 1]} : vector<16x96xf32> to vector<2x96xf32>
    %369 = vector.extract_strided_slice %9 {offsets = [0, 96], sizes = [1, 32], strides = [1, 1]} : vector<2x128xf32> to vector<1x32xf32>
    %370 = vector.extract_strided_slice %368 {offsets = [0, 0], sizes = [2, 64], strides = [1, 1]} : vector<2x96xf32> to vector<2x64xf32>
    %371 = vector.extract_strided_slice %367 {offsets = [0, 0], sizes = [2, 64], strides = [1, 1]} : vector<2x96xf32> to vector<2x64xf32>
    %372 = arith.addf %370, %371 : vector<2x64xf32>
    %373 = arith.negf %372 : vector<2x64xf32>
    %374 = math.exp %373 : vector<2x64xf32>
    %cst_50 = arith.constant 1.000000e+00 : f32
    %375 = vector.broadcast %cst_50 : f32 to vector<2x64xf32>
    %376 = arith.addf %375, %374 : vector<2x64xf32>
    %377 = arith.divf %375, %376 : vector<2x64xf32>
    %378 = vector.extract_strided_slice %377 {offsets = [0, 0], sizes = [2, 32], strides = [1, 1]} : vector<2x64xf32> to vector<2x32xf32>
    %379 = vector.extract_strided_slice %377 {offsets = [0, 32], sizes = [2, 32], strides = [1, 1]} : vector<2x64xf32> to vector<2x32xf32>
    %380 = vector.extract_strided_slice %368 {offsets = [0, 64], sizes = [2, 32], strides = [1, 1]} : vector<2x96xf32> to vector<2x32xf32>
    %381 = vector.extract_strided_slice %367 {offsets = [0, 64], sizes = [2, 32], strides = [1, 1]} : vector<2x96xf32> to vector<2x32xf32>
    %382 = vector.broadcast %369 : vector<1x32xf32> to vector<2x32xf32>
    %383 = arith.addf %381, %382 : vector<2x32xf32>
    %384 = arith.mulf %378, %383 : vector<2x32xf32>
    %385 = arith.addf %380, %384 : vector<2x32xf32>
    %386 = math.tanh %385 : vector<2x32xf32>
    %cst_51 = arith.constant 1.000000e+00 : f32
    %387 = vector.broadcast %cst_51 : f32 to vector<2x32xf32>
    %388 = arith.subf %387, %379 : vector<2x32xf32>
    %389 = arith.mulf %388, %386 : vector<2x32xf32>
    %390 = arith.mulf %379, %333 : vector<2x32xf32>
    %391 = arith.addf %389, %390 : vector<2x32xf32>
    %cst_52 = arith.constant 0.000000e+00 : f32
    %392 = vector.broadcast %cst_52 : f32 to vector<2x32xf32>
    %393 = arith.select %26, %391, %392 : vector<2x32xi1>, vector<2x32xf32>
    %394 = arith.select %26, %391, %333 : vector<2x32xi1>, vector<2x32xf32>
    %395 = vector.extract_strided_slice %366 {offsets = [0, 128], sizes = [2, 96], strides = [1, 1]} : vector<2x384xf32> to vector<2x96xf32>
    %396 = vector.extract_strided_slice %366 {offsets = [0, 256], sizes = [2, 96], strides = [1, 1]} : vector<2x384xf32> to vector<2x96xf32>
    %397 = vector.extract_strided_slice %9 {offsets = [1, 0], sizes = [1, 96], strides = [1, 1]} : vector<2x128xf32> to vector<1x96xf32>
    %398 = vector.broadcast %397 : vector<1x96xf32> to vector<2x96xf32>
    %399 = arith.addf %396, %398 : vector<2x96xf32>
    %400 = vector.extract_strided_slice %9 {offsets = [1, 96], sizes = [1, 32], strides = [1, 1]} : vector<2x128xf32> to vector<1x32xf32>
    %401 = vector.extract_strided_slice %399 {offsets = [0, 0], sizes = [2, 64], strides = [1, 1]} : vector<2x96xf32> to vector<2x64xf32>
    %402 = vector.extract_strided_slice %395 {offsets = [0, 0], sizes = [2, 64], strides = [1, 1]} : vector<2x96xf32> to vector<2x64xf32>
    %403 = arith.addf %401, %402 : vector<2x64xf32>
    %404 = arith.negf %403 : vector<2x64xf32>
    %405 = math.exp %404 : vector<2x64xf32>
    %cst_53 = arith.constant 1.000000e+00 : f32
    %406 = vector.broadcast %cst_53 : f32 to vector<2x64xf32>
    %407 = arith.addf %406, %405 : vector<2x64xf32>
    %408 = arith.divf %406, %407 : vector<2x64xf32>
    %409 = vector.extract_strided_slice %408 {offsets = [0, 0], sizes = [2, 32], strides = [1, 1]} : vector<2x64xf32> to vector<2x32xf32>
    %410 = vector.extract_strided_slice %408 {offsets = [0, 32], sizes = [2, 32], strides = [1, 1]} : vector<2x64xf32> to vector<2x32xf32>
    %411 = vector.extract_strided_slice %399 {offsets = [0, 64], sizes = [2, 32], strides = [1, 1]} : vector<2x96xf32> to vector<2x32xf32>
    %412 = vector.extract_strided_slice %395 {offsets = [0, 64], sizes = [2, 32], strides = [1, 1]} : vector<2x96xf32> to vector<2x32xf32>
    %413 = vector.broadcast %400 : vector<1x32xf32> to vector<2x32xf32>
    %414 = arith.addf %412, %413 : vector<2x32xf32>
    %415 = arith.mulf %409, %414 : vector<2x32xf32>
    %416 = arith.addf %411, %415 : vector<2x32xf32>
    %417 = math.tanh %416 : vector<2x32xf32>
    %cst_54 = arith.constant 1.000000e+00 : f32
    %418 = vector.broadcast %cst_54 : f32 to vector<2x32xf32>
    %419 = arith.subf %418, %410 : vector<2x32xf32>
    %420 = arith.mulf %419, %417 : vector<2x32xf32>
    %421 = arith.mulf %410, %364 : vector<2x32xf32>
    %422 = arith.addf %420, %421 : vector<2x32xf32>
    %cst_55 = arith.constant 0.000000e+00 : f32
    %423 = vector.broadcast %cst_55 : f32 to vector<2x32xf32>
    %424 = arith.select %24, %422, %423 : vector<2x32xi1>, vector<2x32xf32>
    %425 = arith.select %24, %422, %364 : vector<2x32xi1>, vector<2x32xf32>
    %426 = tpu.concatenate %394, %425, %393 in 1 : vector<2x32xf32>, vector<2x32xf32>, vector<2x32xf32> -> vector<2x96xf32>
    %cst_56 = arith.constant dense<0.000000e+00> : vector<2x384xf32>
    %427 = tpu.matmul %426, %8, %cst_56 {dimension_numbers = #tpu.dot_dimension_numbers<[1], [0], [0], [1], [0, 0, 1, 1], [], []>} : vector<2x96xf32>, vector<96x384xf32>, vector<2x384xf32> -> vector<2x384xf32>
    %428 = vector.extract_strided_slice %427 {offsets = [0, 0], sizes = [2, 96], strides = [1, 1]} : vector<2x384xf32> to vector<2x96xf32>
    %429 = vector.extract_strided_slice %7 {offsets = [14, 0], sizes = [2, 96], strides = [1, 1]} : vector<16x96xf32> to vector<2x96xf32>
    %430 = vector.extract_strided_slice %9 {offsets = [0, 96], sizes = [1, 32], strides = [1, 1]} : vector<2x128xf32> to vector<1x32xf32>
    %431 = vector.extract_strided_slice %429 {offsets = [0, 0], sizes = [2, 64], strides = [1, 1]} : vector<2x96xf32> to vector<2x64xf32>
    %432 = vector.extract_strided_slice %428 {offsets = [0, 0], sizes = [2, 64], strides = [1, 1]} : vector<2x96xf32> to vector<2x64xf32>
    %433 = arith.addf %431, %432 : vector<2x64xf32>
    %434 = arith.negf %433 : vector<2x64xf32>
    %435 = math.exp %434 : vector<2x64xf32>
    %cst_57 = arith.constant 1.000000e+00 : f32
    %436 = vector.broadcast %cst_57 : f32 to vector<2x64xf32>
    %437 = arith.addf %436, %435 : vector<2x64xf32>
    %438 = arith.divf %436, %437 : vector<2x64xf32>
    %439 = vector.extract_strided_slice %438 {offsets = [0, 0], sizes = [2, 32], strides = [1, 1]} : vector<2x64xf32> to vector<2x32xf32>
    %440 = vector.extract_strided_slice %438 {offsets = [0, 32], sizes = [2, 32], strides = [1, 1]} : vector<2x64xf32> to vector<2x32xf32>
    %441 = vector.extract_strided_slice %429 {offsets = [0, 64], sizes = [2, 32], strides = [1, 1]} : vector<2x96xf32> to vector<2x32xf32>
    %442 = vector.extract_strided_slice %428 {offsets = [0, 64], sizes = [2, 32], strides = [1, 1]} : vector<2x96xf32> to vector<2x32xf32>
    %443 = vector.broadcast %430 : vector<1x32xf32> to vector<2x32xf32>
    %444 = arith.addf %442, %443 : vector<2x32xf32>
    %445 = arith.mulf %439, %444 : vector<2x32xf32>
    %446 = arith.addf %441, %445 : vector<2x32xf32>
    %447 = math.tanh %446 : vector<2x32xf32>
    %cst_58 = arith.constant 1.000000e+00 : f32
    %448 = vector.broadcast %cst_58 : f32 to vector<2x32xf32>
    %449 = arith.subf %448, %440 : vector<2x32xf32>
    %450 = arith.mulf %449, %447 : vector<2x32xf32>
    %451 = arith.mulf %440, %394 : vector<2x32xf32>
    %452 = arith.addf %450, %451 : vector<2x32xf32>
    %cst_59 = arith.constant 0.000000e+00 : f32
    %453 = vector.broadcast %cst_59 : f32 to vector<2x32xf32>
    %454 = arith.select %28, %452, %453 : vector<2x32xi1>, vector<2x32xf32>
    %455 = arith.select %28, %452, %394 : vector<2x32xi1>, vector<2x32xf32>
    %456 = vector.extract_strided_slice %427 {offsets = [0, 128], sizes = [2, 96], strides = [1, 1]} : vector<2x384xf32> to vector<2x96xf32>
    %457 = vector.extract_strided_slice %427 {offsets = [0, 256], sizes = [2, 96], strides = [1, 1]} : vector<2x384xf32> to vector<2x96xf32>
    %458 = vector.extract_strided_slice %9 {offsets = [1, 0], sizes = [1, 96], strides = [1, 1]} : vector<2x128xf32> to vector<1x96xf32>
    %459 = vector.broadcast %458 : vector<1x96xf32> to vector<2x96xf32>
    %460 = arith.addf %457, %459 : vector<2x96xf32>
    %461 = vector.extract_strided_slice %9 {offsets = [1, 96], sizes = [1, 32], strides = [1, 1]} : vector<2x128xf32> to vector<1x32xf32>
    %462 = vector.extract_strided_slice %460 {offsets = [0, 0], sizes = [2, 64], strides = [1, 1]} : vector<2x96xf32> to vector<2x64xf32>
    %463 = vector.extract_strided_slice %456 {offsets = [0, 0], sizes = [2, 64], strides = [1, 1]} : vector<2x96xf32> to vector<2x64xf32>
    %464 = arith.addf %462, %463 : vector<2x64xf32>
    %465 = arith.negf %464 : vector<2x64xf32>
    %466 = math.exp %465 : vector<2x64xf32>
    %cst_60 = arith.constant 1.000000e+00 : f32
    %467 = vector.broadcast %cst_60 : f32 to vector<2x64xf32>
    %468 = arith.addf %467, %466 : vector<2x64xf32>
    %469 = arith.divf %467, %468 : vector<2x64xf32>
    %470 = vector.extract_strided_slice %469 {offsets = [0, 0], sizes = [2, 32], strides = [1, 1]} : vector<2x64xf32> to vector<2x32xf32>
    %471 = vector.extract_strided_slice %469 {offsets = [0, 32], sizes = [2, 32], strides = [1, 1]} : vector<2x64xf32> to vector<2x32xf32>
    %472 = vector.extract_strided_slice %460 {offsets = [0, 64], sizes = [2, 32], strides = [1, 1]} : vector<2x96xf32> to vector<2x32xf32>
    %473 = vector.extract_strided_slice %456 {offsets = [0, 64], sizes = [2, 32], strides = [1, 1]} : vector<2x96xf32> to vector<2x32xf32>
    %474 = vector.broadcast %461 : vector<1x32xf32> to vector<2x32xf32>
    %475 = arith.addf %473, %474 : vector<2x32xf32>
    %476 = arith.mulf %470, %475 : vector<2x32xf32>
    %477 = arith.addf %472, %476 : vector<2x32xf32>
    %478 = math.tanh %477 : vector<2x32xf32>
    %cst_61 = arith.constant 1.000000e+00 : f32
    %479 = vector.broadcast %cst_61 : f32 to vector<2x32xf32>
    %480 = arith.subf %479, %471 : vector<2x32xf32>
    %481 = arith.mulf %480, %478 : vector<2x32xf32>
    %482 = arith.mulf %471, %425 : vector<2x32xf32>
    %483 = arith.addf %481, %482 : vector<2x32xf32>
    %cst_62 = arith.constant 0.000000e+00 : f32
    %484 = vector.broadcast %cst_62 : f32 to vector<2x32xf32>
    %485 = arith.select %26, %483, %484 : vector<2x32xi1>, vector<2x32xf32>
    %486 = arith.select %26, %483, %425 : vector<2x32xi1>, vector<2x32xf32>
    %487 = tpu.concatenate %455, %486, %454 in 1 : vector<2x32xf32>, vector<2x32xf32>, vector<2x32xf32> -> vector<2x96xf32>
    %cst_63 = arith.constant dense<0.000000e+00> : vector<2x384xf32>
    %488 = tpu.matmul %487, %8, %cst_63 {dimension_numbers = #tpu.dot_dimension_numbers<[1], [0], [0], [1], [0, 0, 1, 1], [], []>} : vector<2x96xf32>, vector<96x384xf32>, vector<2x384xf32> -> vector<2x384xf32>
    %489 = vector.extract_strided_slice %488 {offsets = [0, 128], sizes = [2, 96], strides = [1, 1]} : vector<2x384xf32> to vector<2x96xf32>
    %490 = vector.extract_strided_slice %488 {offsets = [0, 256], sizes = [2, 96], strides = [1, 1]} : vector<2x384xf32> to vector<2x96xf32>
    %491 = vector.extract_strided_slice %9 {offsets = [1, 0], sizes = [1, 96], strides = [1, 1]} : vector<2x128xf32> to vector<1x96xf32>
    %492 = vector.broadcast %491 : vector<1x96xf32> to vector<2x96xf32>
    %493 = arith.addf %490, %492 : vector<2x96xf32>
    %494 = vector.extract_strided_slice %9 {offsets = [1, 96], sizes = [1, 32], strides = [1, 1]} : vector<2x128xf32> to vector<1x32xf32>
    %495 = vector.extract_strided_slice %493 {offsets = [0, 0], sizes = [2, 64], strides = [1, 1]} : vector<2x96xf32> to vector<2x64xf32>
    %496 = vector.extract_strided_slice %489 {offsets = [0, 0], sizes = [2, 64], strides = [1, 1]} : vector<2x96xf32> to vector<2x64xf32>
    %497 = arith.addf %495, %496 : vector<2x64xf32>
    %498 = arith.negf %497 : vector<2x64xf32>
    %499 = math.exp %498 : vector<2x64xf32>
    %cst_64 = arith.constant 1.000000e+00 : f32
    %500 = vector.broadcast %cst_64 : f32 to vector<2x64xf32>
    %501 = arith.addf %500, %499 : vector<2x64xf32>
    %502 = arith.divf %500, %501 : vector<2x64xf32>
    %503 = vector.extract_strided_slice %502 {offsets = [0, 0], sizes = [2, 32], strides = [1, 1]} : vector<2x64xf32> to vector<2x32xf32>
    %504 = vector.extract_strided_slice %502 {offsets = [0, 32], sizes = [2, 32], strides = [1, 1]} : vector<2x64xf32> to vector<2x32xf32>
    %505 = vector.extract_strided_slice %493 {offsets = [0, 64], sizes = [2, 32], strides = [1, 1]} : vector<2x96xf32> to vector<2x32xf32>
    %506 = vector.extract_strided_slice %489 {offsets = [0, 64], sizes = [2, 32], strides = [1, 1]} : vector<2x96xf32> to vector<2x32xf32>
    %507 = vector.broadcast %494 : vector<1x32xf32> to vector<2x32xf32>
    %508 = arith.addf %506, %507 : vector<2x32xf32>
    %509 = arith.mulf %503, %508 : vector<2x32xf32>
    %510 = arith.addf %505, %509 : vector<2x32xf32>
    %511 = math.tanh %510 : vector<2x32xf32>
    %cst_65 = arith.constant 1.000000e+00 : f32
    %512 = vector.broadcast %cst_65 : f32 to vector<2x32xf32>
    %513 = arith.subf %512, %504 : vector<2x32xf32>
    %514 = arith.mulf %513, %511 : vector<2x32xf32>
    %515 = arith.mulf %504, %486 : vector<2x32xf32>
    %516 = arith.addf %514, %515 : vector<2x32xf32>
    %cst_66 = arith.constant 0.000000e+00 : f32
    %517 = vector.broadcast %cst_66 : f32 to vector<2x32xf32>
    %518 = arith.select %28, %516, %517 : vector<2x32xi1>, vector<2x32xf32>
    %519 = arith.select %28, %516, %486 : vector<2x32xi1>, vector<2x32xf32>
    %520 = tpu.concatenate %119, %180, %241, %302, %363, %424, %485, %518 in 1 : vector<2x32xf32>, vector<2x32xf32>, vector<2x32xf32>, vector<2x32xf32>, vector<2x32xf32>, vector<2x32xf32>, vector<2x32xf32>, vector<2x32xf32> -> vector<2x256xf32>
    %c0_67 = arith.constant 0 : index
    %c0_68 = arith.constant 0 : index
    %521 = vector.load %arg5[%c0_67, %c0_68] : memref<2x256xf32, #tpu.memory_space<vmem>>, vector<2x256xf32>
    tpu.vector_store %arg5[%c0_67, %c0_68], %520 {strides = array<i32>} : memref<2x256xf32, #tpu.memory_space<vmem>>, vector<2x256xf32>,
    %522 = tpu.concatenate %455, %519 in 0 : vector<2x32xf32>, vector<2x32xf32> -> vector<4x32xf32>
    %c0_69 = arith.constant 0 : index
    %c0_70 = arith.constant 0 : index
    %523 = vector.load %arg6[%c0_69, %c0_70] : memref<4x32xf32, #tpu.memory_space<vmem>>, vector<4x32xf32>
    tpu.vector_store %arg6[%c0_69, %c0_70], %522 {strides = array<i32>} : memref<4x32xf32, #tpu.memory_space<vmem>>, vector<4x32xf32>,
    return
  }
}

</mosaic_0001>

<llo_original>
// kernel: chat_encoder_forward.1
$region0: #{chat_encoder_forward.1}
  #allocation0 [shape = 'u32[]', space=smem, size = 0x4, offset = 0x4, fixed_abs, tag = 'smem constant byte address 0x4 - core index']
  #allocation1 [shape = 'u32[144,128]{1,0:T(1,128)}', space=vmem, size = 0x12000, scoped, tag = 'internal scratch']
  %s0 = inlined_call_operand.vmem [shape: s32[16,1], index: 0, kind: input, shape index: {}]
  %s1 = inlined_call_operand.vmem [shape: s32[2,1], index: 1, kind: input, shape index: {}]
  %s2 = inlined_call_operand.vmem [shape: f32[32,96], index: 2, kind: input, shape index: {}]
  %s3 = inlined_call_operand.hbm [shape: f32[96,384], index: 3, kind: input, shape index: {}]
  %s4 = inlined_call_operand.vmem [shape: f32[2,128], index: 4, kind: input, shape index: {}]
  %s5 = inlined_call_operand.vmem [shape: f32[2,256], index: 5, kind: output, shape index: {0}]
  %s6 = inlined_call_operand.hbm [shape: f32[4,32], index: 6, kind: output, shape index: {1}]
  %7 = xla_tuple %s5, %s6
  %s8 = sld [smem:[#allocation0]]
  $region42: #{chat_encoder_forward.1} parent=0
    _
  %s10 = ssub.s32 1, %s8
  %s11 = scalar_select 0, %s10, %s8
  $region1: #{chat_encoder_forward.1} parent=0
    #allocation2 [shape = 'u8[147456]{0}', space=vmem, size = 0x24000, scoped, tag = 'input window, operand 3, single buffered']
    #allocation3 [shape = 's32[1]{0}', space=sflag, size = 0x4, scoped, tag = 'scoped memory for chat_encoder_forward.1']
    #allocation4 [shape = 's32[1]{0}', space=sflag, size = 0x4, scoped, tag = 'scoped memory for chat_encoder_forward.1']
    #allocation5 [shape = 'u8[2048]{0}', space=vmem, size = 0x800, scoped, tag = 'output window, operand 1, single buffered']
    %12 = vsyncpa [#allocation3], 0
    %13 = vsyncpa [#allocation4], 0
    // Predicated region
    $region2: #{chat_encoder_forward.1} parent=1 // pred_check
      _
    $region3: #{chat_encoder_forward.1} parent=1 // pred_check_branch
      %15 = sbr.rel (0) target = $region5
    $region4: #{chat_encoder_forward.1} parent=1 // pred_region
      _
    $region5: #{chat_encoder_forward.1} parent=1 // pred_fallthru
      _
    // Predicated region
    $region6: #{chat_encoder_forward.1} parent=1 // pred_check
      _
    $region7: #{chat_encoder_forward.1} parent=1 // pred_check_branch
      %17 = sbr.rel (0) target = $region9
    $region8: #{chat_encoder_forward.1} parent=1 // pred_region
      _
    $region9: #{chat_encoder_forward.1} parent=1 // pred_fallthru
      _
    // Predicated region
    $region10: #{chat_encoder_forward.1} parent=1 // pred_check
      _
    $region11: #{chat_encoder_forward.1} parent=1 // pred_check_branch
      %19 = sbr.rel (0) target = $region13
    $region12: #{chat_encoder_forward.1} parent=1 // pred_region
      _
    $region13: #{chat_encoder_forward.1} parent=1 // pred_fallthru
      _
    // Predicated region
    $region14: #{chat_encoder_forward.1} parent=1 // pred_check
      _
    $region15: #{chat_encoder_forward.1} parent=1 // pred_check_branch
      %21 = sbr.rel (0) target = $region17
    $region16: #{chat_encoder_forward.1} parent=1 // pred_region
      %s23 = ssub.s32 4608, 4608
      %24 = vsyncadd [#allocation3], %s23
      %s25 = sshll.u32 [#allocation2], 4
      %s26 = int_to_ptr.vmem [resolvable:$true] %s25
      %31 = dma.hbm_to_vmem [thread:$0]  %s3, 4608, %s26, [#allocation3], 384, 384, 24
    $region17: #{chat_encoder_forward.1} parent=1 // pred_fallthru
      _
    // Predicated region
    $region18: #{chat_encoder_forward.1} parent=1 // pred_check
      _
    $region19: #{chat_encoder_forward.1} parent=1 // pred_check_branch
      %33 = sbr.rel (0) target = $region21
    $region20: #{chat_encoder_forward.1} parent=1 // pred_region
      _
    $region21: #{chat_encoder_forward.1} parent=1 // pred_fallthru
      _
    // Predicated region
    $region22: #{chat_encoder_forward.1} parent=1 // pred_check
      _
    $region23: #{chat_encoder_forward.1} parent=1 // pred_check_branch
      %35 = sbr.rel (0) target = $region25
    $region24: #{chat_encoder_forward.1} parent=1 // pred_region
      %36 = dma.done [#allocation3], 4608
    $region25: #{chat_encoder_forward.1} parent=1 // pred_fallthru
      _
    %v37 = vld [vmem:[%s0] sm:$0xff]
    %v38 = vld [vmem:[%s0 + $0x8] sm:$0xff]
    %v39 = vlaneseq
    %v40 = vand.u32 %v39, 127
    %41 = vset.pattern.permute.xlu0 0
    %42 = vperm.xlu0 %41, %v37
    %v43 = vpop.permute.xlu0 %42
    %44 = vset.pattern.permute.xlu0 0
    %45 = vperm.xlu0 %44, %v38
    %v46 = vpop.permute.xlu0 %45
    %vm47 = vcmp.eq.s32.totalorder %v43, %v40
    %vm48 = vcmp.eq.s32.totalorder %v46, %v40
    %v49 = vsel %vm47, 1, 0
    %v50 = vsel %vm48, 1, 0
    %v51 = vcvt.s32.f32 %v49
    %v52 = vcvt.s32.f32 %v50
    %v53 = vld [vmem:[%s2] sm:$0xff]
    %v54 = vld [vmem:[%s2 + $0x8] sm:$0xff]
    %v55 = vld [vmem:[%s2 + $0x10] sm:$0xff]
    %v56 = vld [vmem:[%s2 + $0x18] sm:$0xff]
    %vm57 = vcmask 261120
    %v59 = vsel %vm57, %v51, 0
    %v62 = vsel %vm57, %v52, 0
    %64 = vmatprep.subr.mxu0 0.0
    %65 = vmatpush1.msra.mxu0 %v53
    %66 = vmatprep.subr.mxu0 0.0
    %67 = vmatpush1.msra.mxu0 %v54
    %68 = vmatprep.subr.mxu0 0.0
    %69 = vmatpush1.msra.mxu0 %v55
    %70 = vmatprep.subr.mxu0 0.0
    %71 = vmatpush1.msra.mxu0 %v56
    %72 = vmatprep.subr.mxu0 0.0
    %73 = vmatpush1.msra.mxu0 0.0
    %74 = vmatprep.subr.mxu0 0.0
    %75 = vmatpush1.msra.mxu0 0.0
    %76 = vmatprep.subr.mxu0 0.0
    %77 = vmatpush1.msra.mxu0 0.0
    %78 = vmatprep.subr.mxu0 0.0
    %79 = vmatpush1.msra.mxu0 0.0
    %80 = vmatprep.subr.mxu0 0.0
    %81 = vmatpush1.msra.mxu0 0.0
    %82 = vmatprep.subr.mxu0 0.0
    %83 = vmatpush1.msra.mxu0 0.0
    %84 = vmatprep.subr.mxu0 0.0
    %85 = vmatpush1.msra.mxu0 0.0
    %86 = vmatprep.subr.mxu0 0.0
    %87 = vmatpush1.msra.mxu0 0.0
    %88 = vmatprep.subr.mxu0 0.0
    %89 = vmatpush1.msra.mxu0 0.0
    %90 = vmatprep.subr.mxu0 0.0
    %91 = vmatpush1.msra.mxu0 0.0
    %92 = vmatprep.subr.mxu0 0.0
    %93 = vmatpush1.msra.mxu0 0.0
    %94 = vmatprep.subr.mxu0 0.0
    %95 = vmatpush1.msra.mxu0 0.0
    %96 = vmatprep.subr.mxu0 0.0
    %97 = vmatpush1.msra.mxu0 0.0
    %98 = vmatprep.subr.mxu0 0.0
    %99 = vmatpush1.msra.mxu0 0.0
    %100 = vmatprep.subr.mxu0 0.0
    %101 = vmatpush1.msra.mxu0 0.0
    %102 = vmatprep.subr.mxu0 0.0
    %103 = vmatpush1.msra.mxu0 0.0
    %104 = vmatprep.subr.mxu0 0.0
    %105 = vmatpush1.msra.mxu0 0.0
    %106 = vmatprep.subr.mxu0 0.0
    %107 = vmatpush1.msra.mxu0 0.0
    %108 = vmatprep.subr.mxu0 0.0
    %109 = vmatpush1.msra.mxu0 0.0
    %110 = vmatprep.subr.mxu0 0.0
    %111 = vmatpush1.msra.mxu0 0.0
    %112 = vmatprep.subr.mxu0 0.0
    %113 = vmatpush1.msra.mxu0 0.0
    %114 = vmatprep.subr.mxu0 0.0
    %115 = vmatpush1.msra.mxu0 0.0
    %116 = vmatprep.subr.mxu0 0.0
    %117 = vmatpush1.msra.mxu0 0.0
    %118 = vmatprep.subr.mxu0 0.0
    %119 = vmatpush1.msra.mxu0 0.0
    %120 = vmatprep.subr.mxu0 0.0
    %121 = vmatpush1.msra.mxu0 0.0
    %122 = vmatprep.subr.mxu0 0.0
    %123 = vmatpush1.msra.mxu0 0.0
    %124 = vmatprep.subr.mxu0 0.0
    %125 = vmatpush1.msra.mxu0 0.0
    %126 = vmatprep.subr.mxu0 0.0
    %127 = vmatpush1.msra.mxu0 0.0
    %128 = vmatprep.mubr.f32.mxu0 0.0
    %129 = vmatmul.mubr.f32.gmra.mrb[0].mxu0 %v59
    %v130 = vpop.f32.mrb[0].mxu0
    %v131 = vadd.f32 0.0, %v130
    %v132 = vpop.f32.mrb[0].mxu0
    %133 = vmatprep.mubr.f32.mxu0 0.0
    %134 = vmatmul.mubr.f32.gmra.mrb[0].mxu0 %v62
    %v135 = vpop.f32.mrb[0].mxu0
    %v136 = vadd.f32 0.0, %v135
    %v137 = vpop.f32.mrb[0].mxu0
    %138 = vdwg.mxu0
    %v139 = vld [vmem:[#allocation2] sm:$0xff]
    %v140 = vld [vmem:[#allocation2 + $0x8] sm:$0xff]
    %v141 = vld [vmem:[#allocation2 + $0x10] sm:$0xff]
    %v142 = vld [vmem:[#allocation2 + $0x18] sm:$0xff]
    %v143 = vld [vmem:[#allocation2 + $0x20] sm:$0xff]
    %v144 = vld [vmem:[#allocation2 + $0x28] sm:$0xff]
    %v145 = vld [vmem:[#allocation2 + $0x30] sm:$0xff]
    %v146 = vld [vmem:[#allocation2 + $0x38] sm:$0xff]
    %v147 = vld [vmem:[#allocation2 + $0x40] sm:$0xff]
    %v148 = vld [vmem:[#allocation2 + $0x48] sm:$0xff]
    %v149 = vld [vmem:[#allocation2 + $0x50] sm:$0xff]
    %v150 = vld [vmem:[#allocation2 + $0x58] sm:$0xff]
    %v151 = vld [vmem:[#allocation2 + $0x60] sm:$0xff]
    %v152 = vld [vmem:[#allocation2 + $0x68] sm:$0xff]
    %v153 = vld [vmem:[#allocation2 + $0x70] sm:$0xff]
    %v154 = vld [vmem:[#allocation2 + $0x78] sm:$0xff]
    %v155 = vld [vmem:[#allocation2 + $0x80] sm:$0xff]
    %v156 = vld [vmem:[#allocation2 + $0x88] sm:$0xff]
    %v157 = vld [vmem:[#allocation2 + $0x90] sm:$0xff]
    %v158 = vld [vmem:[#allocation2 + $0x98] sm:$0xff]
    %v159 = vld [vmem:[#allocation2 + $0xa0] sm:$0xff]
    %v160 = vld [vmem:[#allocation2 + $0xa8] sm:$0xff]
    %v161 = vld [vmem:[#allocation2 + $0xb0] sm:$0xff]
    %v162 = vld [vmem:[#allocation2 + $0xb8] sm:$0xff]
    %v163 = vld [vmem:[#allocation2 + $0xc0] sm:$0xff]
    %v164 = vld [vmem:[#allocation2 + $0xc8] sm:$0xff]
    %v165 = vld [vmem:[#allocation2 + $0xd0] sm:$0xff]
    %v166 = vld [vmem:[#allocation2 + $0xd8] sm:$0xff]
    %v167 = vld [vmem:[#allocation2 + $0xe0] sm:$0xff]
    %v168 = vld [vmem:[#allocation2 + $0xe8] sm:$0xff]
    %v169 = vld [vmem:[#allocation2 + $0xf0] sm:$0xff]
    %v170 = vld [vmem:[#allocation2 + $0xf8] sm:$0xff]
    %v171 = vld [vmem:[#allocation2 + $0x100] sm:$0xff]
    %v172 = vld [vmem:[#allocation2 + $0x108] sm:$0xff]
    %v173 = vld [vmem:[#allocation2 + $0x110] sm:$0xff]
    %v174 = vld [vmem:[#allocation2 + $0x118] sm:$0xff]
    %v175 = vld [vmem:[%s4] sm:$0x3]
    %v176 = vld [vmem:[%s1] sm:$0x3]
    %177 = vset.pattern.permute.xlu0 0
    %178 = vperm.xlu0 %177, %v176
    %v179 = vpop.permute.xlu0 %178
    %vm180 = vcmp.gt.s32.totalorder %v179, 0
    %vm181 = vcmp.gt.s32.totalorder %v179, 1
    %vm182 = vcmp.gt.s32.totalorder %v179, 2
    %vm183 = vcmp.gt.s32.totalorder %v179, 3
    %vm184 = vcmp.gt.s32.totalorder %v179, 4
    %vm185 = vcmp.gt.s32.totalorder %v179, 5
    %vm186 = vcmp.gt.s32.totalorder %v179, 6
    %vm187 = vcmp.gt.s32.totalorder %v179, 7
    %vm188 = vcmask 785408
    %v190 = vsel %vm188, 0.0, 0
    %192 = vmatprep.subr.mxu0 %v140
    %193 = vmatpush1.msra.mxu0 %v139
    %194 = vmatprep.subr.mxu0 %v143
    %195 = vmatpush1.msra.mxu0 %v142
    %196 = vmatprep.subr.mxu0 %v146
    %197 = vmatpush1.msra.mxu0 %v145
    %198 = vmatprep.subr.mxu0 %v149
    %199 = vmatpush1.msra.mxu0 %v148
    %200 = vmatprep.subr.mxu0 %v152
    %201 = vmatpush1.msra.mxu0 %v151
    %202 = vmatprep.subr.mxu0 %v155
    %203 = vmatpush1.msra.mxu0 %v154
    %204 = vmatprep.subr.mxu0 %v158
    %205 = vmatpush1.msra.mxu0 %v157
    %206 = vmatprep.subr.mxu0 %v161
    %207 = vmatpush1.msra.mxu0 %v160
    %208 = vmatprep.subr.mxu0 %v164
    %209 = vmatpush1.msra.mxu0 %v163
    %210 = vmatprep.subr.mxu0 %v167
    %211 = vmatpush1.msra.mxu0 %v166
    %212 = vmatprep.subr.mxu0 %v170
    %213 = vmatpush1.msra.mxu0 %v169
    %214 = vmatprep.subr.mxu0 %v173
    %215 = vmatpush1.msra.mxu0 %v172
    %216 = vmatprep.subr.mxu0 0.0
    %217 = vmatpush1.msra.mxu0 0.0
    %218 = vmatprep.subr.mxu0 0.0
    %219 = vmatpush1.msra.mxu0 0.0
    %220 = vmatprep.subr.mxu0 0.0
    %221 = vmatpush1.msra.mxu0 0.0
    %222 = vmatprep.subr.mxu0 0.0
    %223 = vmatpush1.msra.mxu0 0.0
    %224 = vmatprep.subr.mxu0 0.0
    %225 = vmatpush1.msra.mxu0 0.0
    %226 = vmatprep.subr.mxu0 0.0
    %227 = vmatpush1.msra.mxu0 0.0
    %228 = vmatprep.subr.mxu0 0.0
    %229 = vmatpush1.msra.mxu0 0.0
    %230 = vmatprep.subr.mxu0 0.0
    %231 = vmatpush1.msra.mxu0 0.0
    %232 = vmatprep.subr.mxu0 0.0
    %233 = vmatpush1.msra.mxu0 0.0
    %234 = vmatprep.subr.mxu0 0.0
    %235 = vmatpush1.msra.mxu0 0.0
    %236 = vmatprep.subr.mxu0 0.0
    %237 = vmatpush1.msra.mxu0 0.0
    %238 = vmatprep.subr.mxu0 0.0
    %239 = vmatpush1.msra.mxu0 0.0
    %240 = vmatprep.subr.mxu0 0.0
    %241 = vmatpush1.msra.mxu0 0.0
    %242 = vmatprep.subr.mxu0 0.0
    %243 = vmatpush1.msra.mxu0 0.0
    %244 = vmatprep.subr.mxu0 0.0
    %245 = vmatpush1.msra.mxu0 0.0
    %246 = vmatprep.subr.mxu0 0.0
    %247 = vmatpush1.msra.mxu0 0.0
    %248 = vmatprep.subr.mxu0 0.0
    %249 = vmatpush1.msra.mxu0 0.0
    %250 = vmatprep.subr.mxu0 0.0
    %251 = vmatpush1.msra.mxu0 0.0
    %252 = vmatprep.subr.mxu0 0.0
    %253 = vmatpush1.msra.mxu0 0.0
    %254 = vmatprep.subr.mxu0 0.0
    %255 = vmatpush1.msra.mxu0 0.0
    %256 = vmatprep.mubr.f32.mxu0 0.0
    %257 = vmatmul.mubr.f32.gmra.mrb[0].mxu0 %v190
    %v258 = vpop.f32.mrb[0].mxu0
    %v259 = vadd.f32 0.0, %v258
    %v260 = vpop.f32.mrb[0].mxu0
    %261 = vdwg.mxu0
    %v262 = vadd.f32 %v131, %v259
    %v263 = vxor.u32 %v262, 2147483648
    %v264 = vmul.f32 %v263, 1.442695
    %v265 = vpow.pop %v264
    %v266 = vadd.f32 %v265, 1.0
    %v267 = vrcp.pop %v266
    %v268 = vmul.f32 1.0, %v267
    %v269 = vlaneseq
    %v270 = vshrl.u32 %v269, 7
    %v271 = vsub.s32 0, %v270
    %v272 = vrot.slane %v175, %v271
    %274 = vrot.lane.b32.xlu0 %v272, 96
    %v275 = vpop.permute.xlu0 %274
    %v277 = vadd.f32 %v259, %v275
    %279 = vrot.lane.b32.xlu0 %v277, 64
    %v280 = vpop.permute.xlu0 %279
    %v282 = vmul.f32 %v268, %v280
    %284 = vrot.lane.b32.xlu0 %v282, 64
    %v285 = vpop.permute.xlu0 %284
    %v287 = vadd.f32 %v131, %v285
    %v288 = vtanh.pop %v287
    %v289 = vsub.f32 1.0, %v268
    %291 = vrot.lane.b32.xlu0 %v288, 96
    %v292 = vpop.permute.xlu0 %291
    %v294 = vmul.f32 %v289, %v292
    %v295 = vmul.f32 %v268, 0.0
    %v296 = vadd.f32 %v294, %v295
    %v297 = vsel %vm180, %v296, 0.0
    %299 = vrot.lane.b32.xlu0 %v297, 96
    %v300 = vpop.permute.xlu0 %299
    %302 = vrot.lane.b32.xlu0 %v297, 32
    %v303 = vpop.permute.xlu0 %302
    %v305 = vsel %vm57, %v300, 0.0
    %vm306 = vcmask 523264
    %v307 = vsel %vm306, %v305, %v303
    %v309 = vsel %vm188, %v307, 0
    %311 = vmatprep.subr.mxu0 %v140
    %312 = vmatpush1.msra.mxu0 %v139
    %313 = vmatprep.subr.mxu0 %v143
    %314 = vmatpush1.msra.mxu0 %v142
    %315 = vmatprep.subr.mxu0 %v146
    %316 = vmatpush1.msra.mxu0 %v145
    %317 = vmatprep.subr.mxu0 %v149
    %318 = vmatpush1.msra.mxu0 %v148
    %319 = vmatprep.subr.mxu0 %v152
    %320 = vmatpush1.msra.mxu0 %v151
    %321 = vmatprep.subr.mxu0 %v155
    %322 = vmatpush1.msra.mxu0 %v154
    %323 = vmatprep.subr.mxu0 %v158
    %324 = vmatpush1.msra.mxu0 %v157
    %325 = vmatprep.subr.mxu0 %v161
    %326 = vmatpush1.msra.mxu0 %v160
    %327 = vmatprep.subr.mxu0 %v164
    %328 = vmatpush1.msra.mxu0 %v163
    %329 = vmatprep.subr.mxu0 %v167
    %330 = vmatpush1.msra.mxu0 %v166
    %331 = vmatprep.subr.mxu0 %v170
    %332 = vmatpush1.msra.mxu0 %v169
    %333 = vmatprep.subr.mxu0 %v173
    %334 = vmatpush1.msra.mxu0 %v172
    %335 = vmatprep.subr.mxu0 0.0
    %336 = vmatpush1.msra.mxu0 0.0
    %337 = vmatprep.subr.mxu0 0.0
    %338 = vmatpush1.msra.mxu0 0.0
    %339 = vmatprep.subr.mxu0 0.0
    %340 = vmatpush1.msra.mxu0 0.0
    %341 = vmatprep.subr.mxu0 0.0
    %342 = vmatpush1.msra.mxu0 0.0
    %343 = vmatprep.subr.mxu0 0.0
    %344 = vmatpush1.msra.mxu0 0.0
    %345 = vmatprep.subr.mxu0 0.0
    %346 = vmatpush1.msra.mxu0 0.0
    %347 = vmatprep.subr.mxu0 0.0
    %348 = vmatpush1.msra.mxu0 0.0
    %349 = vmatprep.subr.mxu0 0.0
    %350 = vmatpush1.msra.mxu0 0.0
    %351 = vmatprep.subr.mxu0 0.0
    %352 = vmatpush1.msra.mxu0 0.0
    %353 = vmatprep.subr.mxu0 0.0
    %354 = vmatpush1.msra.mxu0 0.0
    %355 = vmatprep.subr.mxu0 0.0
    %356 = vmatpush1.msra.mxu0 0.0
    %357 = vmatprep.subr.mxu0 0.0
    %358 = vmatpush1.msra.mxu0 0.0
    %359 = vmatprep.subr.mxu0 0.0
    %360 = vmatpush1.msra.mxu0 0.0
    %361 = vmatprep.subr.mxu0 0.0
    %362 = vmatpush1.msra.mxu0 0.0
    %363 = vmatprep.subr.mxu0 0.0
    %364 = vmatpush1.msra.mxu0 0.0
    %365 = vmatprep.subr.mxu0 0.0
    %366 = vmatpush1.msra.mxu0 0.0
    %367 = vmatprep.subr.mxu0 0.0
    %368 = vmatpush1.msra.mxu0 0.0
    %369 = vmatprep.subr.mxu0 0.0
    %370 = vmatpush1.msra.mxu0 0.0
    %371 = vmatprep.subr.mxu0 0.0
    %372 = vmatpush1.msra.mxu0 0.0
    %373 = vmatprep.subr.mxu0 0.0
    %374 = vmatpush1.msra.mxu0 0.0
    %375 = vmatprep.mubr.f32.mxu0 0.0
    %376 = vmatmul.mubr.f32.gmra.mrb[0].mxu0 %v309
    %v377 = vpop.f32.mrb[0].mxu0
    %v378 = vadd.f32 0.0, %v377
    %v379 = vpop.f32.mrb[0].mxu0
    %v380 = vadd.f32 0.0, %v379
    %381 = vdwg.mxu0
    %382 = vmatprep.subr.mxu0 0.0
    %383 = vmatpush1.msra.mxu0 %v141
    %384 = vmatprep.subr.mxu0 0.0
    %385 = vmatpush1.msra.mxu0 %v144
    %386 = vmatprep.subr.mxu0 0.0
    %387 = vmatpush1.msra.mxu0 %v147
    %388 = vmatprep.subr.mxu0 0.0
    %389 = vmatpush1.msra.mxu0 %v150
    %390 = vmatprep.subr.mxu0 0.0
    %391 = vmatpush1.msra.mxu0 %v153
    %392 = vmatprep.subr.mxu0 0.0
    %393 = vmatpush1.msra.mxu0 %v156
    %394 = vmatprep.subr.mxu0 0.0
    %395 = vmatpush1.msra.mxu0 %v159
    %396 = vmatprep.subr.mxu0 0.0
    %397 = vmatpush1.msra.mxu0 %v162
    %398 = vmatprep.subr.mxu0 0.0
    %399 = vmatpush1.msra.mxu0 %v165
    %400 = vmatprep.subr.mxu0 0.0
    %401 = vmatpush1.msra.mxu0 %v168
    %402 = vmatprep.subr.mxu0 0.0
    %403 = vmatpush1.msra.mxu0 %v171
    %404 = vmatprep.subr.mxu0 0.0
    %405 = vmatpush1.msra.mxu0 %v174
    %406 = vmatprep.subr.mxu0 0.0
    %407 = vmatpush1.msra.mxu0 0.0
    %408 = vmatprep.subr.mxu0 0.0
    %409 = vmatpush1.msra.mxu0 0.0
    %410 = vmatprep.subr.mxu0 0.0
    %411 = vmatpush1.msra.mxu0 0.0
    %412 = vmatprep.subr.mxu0 0.0
    %413 = vmatpush1.msra.mxu0 0.0
    %414 = vmatprep.subr.mxu0 0.0
    %415 = vmatpush1.msra.mxu0 0.0
    %416 = vmatprep.subr.mxu0 0.0
    %417 = vmatpush1.msra.mxu0 0.0
    %418 = vmatprep.subr.mxu0 0.0
    %419 = vmatpush1.msra.mxu0 0.0
    %420 = vmatprep.subr.mxu0 0.0
    %421 = vmatpush1.msra.mxu0 0.0
    %422 = vmatprep.subr.mxu0 0.0
    %423 = vmatpush1.msra.mxu0 0.0
    %424 = vmatprep.subr.mxu0 0.0
    %425 = vmatpush1.msra.mxu0 0.0
    %426 = vmatprep.subr.mxu0 0.0
    %427 = vmatpush1.msra.mxu0 0.0
    %428 = vmatprep.subr.mxu0 0.0
    %429 = vmatpush1.msra.mxu0 0.0
    %430 = vmatprep.subr.mxu0 0.0
    %431 = vmatpush1.msra.mxu0 0.0
    %432 = vmatprep.subr.mxu0 0.0
    %433 = vmatpush1.msra.mxu0 0.0
    %434 = vmatprep.subr.mxu0 0.0
    %435 = vmatpush1.msra.mxu0 0.0
    %436 = vmatprep.subr.mxu0 0.0
    %437 = vmatpush1.msra.mxu0 0.0
    %438 = vmatprep.subr.mxu0 0.0
    %439 = vmatpush1.msra.mxu0 0.0
    %440 = vmatprep.subr.mxu0 0.0
    %441 = vmatpush1.msra.mxu0 0.0
    %442 = vmatprep.subr.mxu0 0.0
    %443 = vmatpush1.msra.mxu0 0.0
    %444 = vmatprep.subr.mxu0 0.0
    %445 = vmatpush1.msra.mxu0 0.0
    %446 = vmatprep.mubr.f32.mxu0 0.0
    %447 = vmatmul.mubr.f32.gmra.mrb[0].mxu0 %v309
    %v448 = vpop.f32.mrb[0].mxu0
    %v449 = vadd.f32 0.0, %v448
    %v450 = vpop.f32.mrb[0].mxu0
    %451 = vdwg.mxu0
    %v453 = vrot.slane %v378, 6
    %v455 = vadd.f32 %v131, %v453
    %v456 = vxor.u32 %v455, 2147483648
    %v457 = vmul.f32 %v456, 1.442695
    %v458 = vpow.pop %v457
    %v459 = vadd.f32 %v458, 1.0
    %v460 = vrcp.pop %v459
    %v461 = vmul.f32 1.0, %v460
    %v462 = vadd.f32 %v378, %v275
    %v464 = vrot.slane %v462, 6
    %465 = vrot.lane.b32.xlu0 %v464, 64
    %v466 = vpop.permute.xlu0 %465
    %v468 = vmul.f32 %v461, %v466
    %470 = vrot.lane.b32.xlu0 %v468, 64
    %v471 = vpop.permute.xlu0 %470
    %v473 = vadd.f32 %v131, %v471
    %v474 = vtanh.pop %v473
    %v475 = vsub.f32 1.0, %v461
    %477 = vrot.lane.b32.xlu0 %v474, 96
    %v478 = vpop.permute.xlu0 %477
    %v480 = vmul.f32 %v475, %v478
    %v481 = vrot.slane %v297, 6
    %v483 = vmul.f32 %v461, %v481
    %v484 = vadd.f32 %v480, %v483
    %v486 = vrot.slane %v484, 2
    %487 = vrot.lane.b32.xlu0 %v486, 96
    %v488 = vpop.permute.xlu0 %487
    %v490 = vsel %vm181, %v488, 0.0
    %v491 = vsel %vm181, %v488, %v300
    %v492 = vlaneseq
    %v493 = vshrl.u32 %v492, 7
    %v494 = vsub.s32 1, %v493
    %v495 = vrot.slane %v175, %v494
    %v496 = vadd.f32 %v449, %v495
    %v497 = vadd.f32 %v496, %v380
    %v498 = vxor.u32 %v497, 2147483648
    %v499 = vmul.f32 %v498, 1.442695
    %v500 = vpow.pop %v499
    %v501 = vadd.f32 %v500, 1.0
    %v502 = vrcp.pop %v501
    %v503 = vmul.f32 1.0, %v502
    %505 = vrot.lane.b32.xlu0 %v495, 96
    %v506 = vpop.permute.xlu0 %505
    %v508 = vadd.f32 %v380, %v506
    %510 = vrot.lane.b32.xlu0 %v508, 64
    %v511 = vpop.permute.xlu0 %510
    %v513 = vmul.f32 %v503, %v511
    %515 = vrot.lane.b32.xlu0 %v513, 64
    %v516 = vpop.permute.xlu0 %515
    %v518 = vadd.f32 %v496, %v516
    %v519 = vtanh.pop %v518
    %v520 = vsub.f32 1.0, %v503
    %522 = vrot.lane.b32.xlu0 %v519, 96
    %v523 = vpop.permute.xlu0 %522
    %v525 = vmul.f32 %v520, %v523
    %v526 = vmul.f32 %v503, 0.0
    %v527 = vadd.f32 %v525, %v526
    %v528 = vsel %vm180, %v527, 0.0
    %530 = vrot.lane.b32.xlu0 %v490, 64
    %v531 = vpop.permute.xlu0 %530
    %v533 = vsel %vm57, %v491, %v528
    %v534 = vsel %vm306, %v533, %v531
    %v536 = vsel %vm188, %v534, 0
    %538 = vmatprep.subr.mxu0 %v140
    %539 = vmatpush1.msra.mxu0 %v139
    %540 = vmatprep.subr.mxu0 %v143
    %541 = vmatpush1.msra.mxu0 %v142
    %542 = vmatprep.subr.mxu0 %v146
    %543 = vmatpush1.msra.mxu0 %v145
    %544 = vmatprep.subr.mxu0 %v149
    %545 = vmatpush1.msra.mxu0 %v148
    %546 = vmatprep.subr.mxu0 %v152
    %547 = vmatpush1.msra.mxu0 %v151
    %548 = vmatprep.subr.mxu0 %v155
    %549 = vmatpush1.msra.mxu0 %v154
    %550 = vmatprep.subr.mxu0 %v158
    %551 = vmatpush1.msra.mxu0 %v157
    %552 = vmatprep.subr.mxu0 %v161
    %553 = vmatpush1.msra.mxu0 %v160
    %554 = vmatprep.subr.mxu0 %v164
    %555 = vmatpush1.msra.mxu0 %v163
    %556 = vmatprep.subr.mxu0 %v167
    %557 = vmatpush1.msra.mxu0 %v166
    %558 = vmatprep.subr.mxu0 %v170
    %559 = vmatpush1.msra.mxu0 %v169
    %560 = vmatprep.subr.mxu0 %v173
    %561 = vmatpush1.msra.mxu0 %v172
    %562 = vmatprep.subr.mxu0 0.0
    %563 = vmatpush1.msra.mxu0 0.0
    %564 = vmatprep.subr.mxu0 0.0
    %565 = vmatpush1.msra.mxu0 0.0
    %566 = vmatprep.subr.mxu0 0.0
    %567 = vmatpush1.msra.mxu0 0.0
    %568 = vmatprep.subr.mxu0 0.0
    %569 = vmatpush1.msra.mxu0 0.0
    %570 = vmatprep.subr.mxu0 0.0
    %571 = vmatpush1.msra.mxu0 0.0
    %572 = vmatprep.subr.mxu0 0.0
    %573 = vmatpush1.msra.mxu0 0.0
    %574 = vmatprep.subr.mxu0 0.0
    %575 = vmatpush1.msra.mxu0 0.0
    %576 = vmatprep.subr.mxu0 0.0
    %577 = vmatpush1.msra.mxu0 0.0
    %578 = vmatprep.subr.mxu0 0.0
    %579 = vmatpush1.msra.mxu0 0.0
    %580 = vmatprep.subr.mxu0 0.0
    %581 = vmatpush1.msra.mxu0 0.0
    %582 = vmatprep.subr.mxu0 0.0
    %583 = vmatpush1.msra.mxu0 0.0
    %584 = vmatprep.subr.mxu0 0.0
    %585 = vmatpush1.msra.mxu0 0.0
    %586 = vmatprep.subr.mxu0 0.0
    %587 = vmatpush1.msra.mxu0 0.0
    %588 = vmatprep.subr.mxu0 0.0
    %589 = vmatpush1.msra.mxu0 0.0
    %590 = vmatprep.subr.mxu0 0.0
    %591 = vmatpush1.msra.mxu0 0.0
    %592 = vmatprep.subr.mxu0 0.0
    %593 = vmatpush1.msra.mxu0 0.0
    %594 = vmatprep.subr.mxu0 0.0
    %595 = vmatpush1.msra.mxu0 0.0
    %596 = vmatprep.subr.mxu0 0.0
    %597 = vmatpush1.msra.mxu0 0.0
    %598 = vmatprep.subr.mxu0 0.0
    %599 = vmatpush1.msra.mxu0 0.0
    %600 = vmatprep.subr.mxu0 0.0
    %601 = vmatpush1.msra.mxu0 0.0
    %602 = vmatprep.mubr.f32.mxu0 0.0
    %603 = vmatmul.mubr.f32.gmra.mrb[0].mxu0 %v536
    %v604 = vpop.f32.mrb[0].mxu0
    %v605 = vadd.f32 0.0, %v604
    %v606 = vpop.f32.mrb[0].mxu0
    %v607 = vadd.f32 0.0, %v606
    %608 = vdwg.mxu0
    %609 = vmatprep.subr.mxu0 0.0
    %610 = vmatpush1.msra.mxu0 %v141
    %611 = vmatprep.subr.mxu0 0.0
    %612 = vmatpush1.msra.mxu0 %v144
    %613 = vmatprep.subr.mxu0 0.0
    %614 = vmatpush1.msra.mxu0 %v147
    %615 = vmatprep.subr.mxu0 0.0
    %616 = vmatpush1.msra.mxu0 %v150
    %617 = vmatprep.subr.mxu0 0.0
    %618 = vmatpush1.msra.mxu0 %v153
    %619 = vmatprep.subr.mxu0 0.0
    %620 = vmatpush1.msra.mxu0 %v156
    %621 = vmatprep.subr.mxu0 0.0
    %622 = vmatpush1.msra.mxu0 %v159
    %623 = vmatprep.subr.mxu0 0.0
    %624 = vmatpush1.msra.mxu0 %v162
    %625 = vmatprep.subr.mxu0 0.0
    %626 = vmatpush1.msra.mxu0 %v165
    %627 = vmatprep.subr.mxu0 0.0
    %628 = vmatpush1.msra.mxu0 %v168
    %629 = vmatprep.subr.mxu0 0.0
    %630 = vmatpush1.msra.mxu0 %v171
    %631 = vmatprep.subr.mxu0 0.0
    %632 = vmatpush1.msra.mxu0 %v174
    %633 = vmatprep.subr.mxu0 0.0
    %634 = vmatpush1.msra.mxu0 0.0
    %635 = vmatprep.subr.mxu0 0.0
    %636 = vmatpush1.msra.mxu0 0.0
    %637 = vmatprep.subr.mxu0 0.0
    %638 = vmatpush1.msra.mxu0 0.0
    %639 = vmatprep.subr.mxu0 0.0
    %640 = vmatpush1.msra.mxu0 0.0
    %641 = vmatprep.subr.mxu0 0.0
    %642 = vmatpush1.msra.mxu0 0.0
    %643 = vmatprep.subr.mxu0 0.0
    %644 = vmatpush1.msra.mxu0 0.0
    %645 = vmatprep.subr.mxu0 0.0
    %646 = vmatpush1.msra.mxu0 0.0
    %647 = vmatprep.subr.mxu0 0.0
    %648 = vmatpush1.msra.mxu0 0.0
    %649 = vmatprep.subr.mxu0 0.0
    %650 = vmatpush1.msra.mxu0 0.0
    %651 = vmatprep.subr.mxu0 0.0
    %652 = vmatpush1.msra.mxu0 0.0
    %653 = vmatprep.subr.mxu0 0.0
    %654 = vmatpush1.msra.mxu0 0.0
    %655 = vmatprep.subr.mxu0 0.0
    %656 = vmatpush1.msra.mxu0 0.0
    %657 = vmatprep.subr.mxu0 0.0
    %658 = vmatpush1.msra.mxu0 0.0
    %659 = vmatprep.subr.mxu0 0.0
    %660 = vmatpush1.msra.mxu0 0.0
    %661 = vmatprep.subr.mxu0 0.0
    %662 = vmatpush1.msra.mxu0 0.0
    %663 = vmatprep.subr.mxu0 0.0
    %664 = vmatpush1.msra.mxu0 0.0
    %665 = vmatprep.subr.mxu0 0.0
    %666 = vmatpush1.msra.mxu0 0.0
    %667 = vmatprep.subr.mxu0 0.0
    %668 = vmatpush1.msra.mxu0 0.0
    %669 = vmatprep.subr.mxu0 0.0
    %670 = vmatpush1.msra.mxu0 0.0
    %671 = vmatprep.subr.mxu0 0.0
    %672 = vmatpush1.msra.mxu0 0.0
    %673 = vmatprep.mubr.f32.mxu0 0.0
    %674 = vmatmul.mubr.f32.gmra.mrb[0].mxu0 %v536
    %v675 = vpop.f32.mrb[0].mxu0
    %v676 = vadd.f32 0.0, %v675
    %v677 = vpop.f32.mrb[0].mxu0
    %678 = vdwg.mxu0
    %v680 = vrot.slane %v605, 4
    %v682 = vadd.f32 %v131, %v680
    %v683 = vxor.u32 %v682, 2147483648
    %v684 = vmul.f32 %v683, 1.442695
    %v685 = vpow.pop %v684
    %v686 = vadd.f32 %v685, 1.0
    %v687 = vrcp.pop %v686
    %v688 = vmul.f32 1.0, %v687
    %v689 = vadd.f32 %v605, %v275
    %v691 = vrot.slane %v689, 4
    %692 = vrot.lane.b32.xlu0 %v691, 64
    %v693 = vpop.permute.xlu0 %692
    %v695 = vmul.f32 %v688, %v693
    %697 = vrot.lane.b32.xlu0 %v695, 64
    %v698 = vpop.permute.xlu0 %697
    %v700 = vadd.f32 %v131, %v698
    %v701 = vtanh.pop %v700
    %v702 = vsub.f32 1.0, %v688
    %704 = vrot.lane.b32.xlu0 %v701, 96
    %v705 = vpop.permute.xlu0 %704
    %v707 = vmul.f32 %v702, %v705
    %v709 = vrot.slane %v491, 4
    %710 = vrot.lane.b32.xlu0 %v709, 32
    %v711 = vpop.permute.xlu0 %710
    %v713 = vmul.f32 %v688, %v711
    %v714 = vadd.f32 %v707, %v713
    %v716 = vrot.slane %v714, 4
    %717 = vrot.lane.b32.xlu0 %v716, 96
    %v718 = vpop.permute.xlu0 %717
    %v720 = vsel %vm182, %v718, 0.0
    %v721 = vsel %vm182, %v718, %v491
    %v722 = vadd.f32 %v676, %v495
    %v723 = vadd.f32 %v722, %v607
    %v724 = vxor.u32 %v723, 2147483648
    %v725 = vmul.f32 %v724, 1.442695
    %v726 = vpow.pop %v725
    %v727 = vadd.f32 %v726, 1.0
    %v728 = vrcp.pop %v727
    %v729 = vmul.f32 1.0, %v728
    %v730 = vadd.f32 %v607, %v506
    %732 = vrot.lane.b32.xlu0 %v730, 64
    %v733 = vpop.permute.xlu0 %732
    %v735 = vmul.f32 %v729, %v733
    %737 = vrot.lane.b32.xlu0 %v735, 64
    %v738 = vpop.permute.xlu0 %737
    %v740 = vadd.f32 %v722, %v738
    %v741 = vtanh.pop %v740
    %v742 = vsub.f32 1.0, %v729
    %744 = vrot.lane.b32.xlu0 %v741, 96
    %v745 = vpop.permute.xlu0 %744
    %v747 = vmul.f32 %v742, %v745
    %v748 = vmul.f32 %v729, %v528
    %v749 = vadd.f32 %v747, %v748
    %v750 = vsel %vm181, %v749, 0.0
    %v751 = vsel %vm181, %v749, %v528
    %753 = vrot.lane.b32.xlu0 %v720, 64
    %v754 = vpop.permute.xlu0 %753
    %v756 = vsel %vm57, %v721, %v751
    %v757 = vsel %vm306, %v756, %v754
    %v759 = vsel %vm188, %v757, 0
    %761 = vmatprep.subr.mxu0 %v140
    %762 = vmatpush1.msra.mxu0 %v139
    %763 = vmatprep.subr.mxu0 %v143
    %764 = vmatpush1.msra.mxu0 %v142
    %765 = vmatprep.subr.mxu0 %v146
    %766 = vmatpush1.msra.mxu0 %v145
    %767 = vmatprep.subr.mxu0 %v149
    %768 = vmatpush1.msra.mxu0 %v148
    %769 = vmatprep.subr.mxu0 %v152
    %770 = vmatpush1.msra.mxu0 %v151
    %771 = vmatprep.subr.mxu0 %v155
    %772 = vmatpush1.msra.mxu0 %v154
    %773 = vmatprep.subr.mxu0 %v158
    %774 = vmatpush1.msra.mxu0 %v157
    %775 = vmatprep.subr.mxu0 %v161
    %776 = vmatpush1.msra.mxu0 %v160
    %777 = vmatprep.subr.mxu0 %v164
    %778 = vmatpush1.msra.mxu0 %v163
    %779 = vmatprep.subr.mxu0 %v167
    %780 = vmatpush1.msra.mxu0 %v166
    %781 = vmatprep.subr.mxu0 %v170
    %782 = vmatpush1.msra.mxu0 %v169
    %783 = vmatprep.subr.mxu0 %v173
    %784 = vmatpush1.msra.mxu0 %v172
    %785 = vmatprep.subr.mxu0 0.0
    %786 = vmatpush1.msra.mxu0 0.0
    %787 = vmatprep.subr.mxu0 0.0
    %788 = vmatpush1.msra.mxu0 0.0
    %789 = vmatprep.subr.mxu0 0.0
    %790 = vmatpush1.msra.mxu0 0.0
    %791 = vmatprep.subr.mxu0 0.0
    %792 = vmatpush1.msra.mxu0 0.0
    %793 = vmatprep.subr.mxu0 0.0
    %794 = vmatpush1.msra.mxu0 0.0
    %795 = vmatprep.subr.mxu0 0.0
    %796 = vmatpush1.msra.mxu0 0.0
    %797 = vmatprep.subr.mxu0 0.0
    %798 = vmatpush1.msra.mxu0 0.0
    %799 = vmatprep.subr.mxu0 0.0
    %800 = vmatpush1.msra.mxu0 0.0
    %801 = vmatprep.subr.mxu0 0.0
    %802 = vmatpush1.msra.mxu0 0.0
    %803 = vmatprep.subr.mxu0 0.0
    %804 = vmatpush1.msra.mxu0 0.0
    %805 = vmatprep.subr.mxu0 0.0
    %806 = vmatpush1.msra.mxu0 0.0
    %807 = vmatprep.subr.mxu0 0.0
    %808 = vmatpush1.msra.mxu0 0.0
    %809 = vmatprep.subr.mxu0 0.0
    %810 = vmatpush1.msra.mxu0 0.0
    %811 = vmatprep.subr.mxu0 0.0
    %812 = vmatpush1.msra.mxu0 0.0
    %813 = vmatprep.subr.mxu0 0.0
    %814 = vmatpush1.msra.mxu0 0.0
    %815 = vmatprep.subr.mxu0 0.0
    %816 = vmatpush1.msra.mxu0 0.0
    %817 = vmatprep.subr.mxu0 0.0
    %818 = vmatpush1.msra.mxu0 0.0
    %819 = vmatprep.subr.mxu0 0.0
    %820 = vmatpush1.msra.mxu0 0.0
    %821 = vmatprep.subr.mxu0 0.0
    %822 = vmatpush1.msra.mxu0 0.0
    %823 = vmatprep.subr.mxu0 0.0
    %824 = vmatpush1.msra.mxu0 0.0
    %825 = vmatprep.mubr.f32.mxu0 0.0
    %826 = vmatmul.mubr.f32.gmra.mrb[0].mxu0 %v759
    %v827 = vpop.f32.mrb[0].mxu0
    %v828 = vadd.f32 0.0, %v827
    %v829 = vpop.f32.mrb[0].mxu0
    %v830 = vadd.f32 0.0, %v829
    %831 = vdwg.mxu0
    %832 = vmatprep.subr.mxu0 0.0
    %833 = vmatpush1.msra.mxu0 %v141
    %834 = vmatprep.subr.mxu0 0.0
    %835 = vmatpush1.msra.mxu0 %v144
    %836 = vmatprep.subr.mxu0 0.0
    %837 = vmatpush1.msra.mxu0 %v147
    %838 = vmatprep.subr.mxu0 0.0
    %839 = vmatpush1.msra.mxu0 %v150
    %840 = vmatprep.subr.mxu0 0.0
    %841 = vmatpush1.msra.mxu0 %v153
    %842 = vmatprep.subr.mxu0 0.0
    %843 = vmatpush1.msra.mxu0 %v156
    %844 = vmatprep.subr.mxu0 0.0
    %845 = vmatpush1.msra.mxu0 %v159
    %846 = vmatprep.subr.mxu0 0.0
    %847 = vmatpush1.msra.mxu0 %v162
    %848 = vmatprep.subr.mxu0 0.0
    %849 = vmatpush1.msra.mxu0 %v165
    %850 = vmatprep.subr.mxu0 0.0
    %851 = vmatpush1.msra.mxu0 %v168
    %852 = vmatprep.subr.mxu0 0.0
    %853 = vmatpush1.msra.mxu0 %v171
    %854 = vmatprep.subr.mxu0 0.0
    %855 = vmatpush1.msra.mxu0 %v174
    %856 = vmatprep.subr.mxu0 0.0
    %857 = vmatpush1.msra.mxu0 0.0
    %858 = vmatprep.subr.mxu0 0.0
    %859 = vmatpush1.msra.mxu0 0.0
    %860 = vmatprep.subr.mxu0 0.0
    %861 = vmatpush1.msra.mxu0 0.0
    %862 = vmatprep.subr.mxu0 0.0
    %863 = vmatpush1.msra.mxu0 0.0
    %864 = vmatprep.subr.mxu0 0.0
    %865 = vmatpush1.msra.mxu0 0.0
    %866 = vmatprep.subr.mxu0 0.0
    %867 = vmatpush1.msra.mxu0 0.0
    %868 = vmatprep.subr.mxu0 0.0
    %869 = vmatpush1.msra.mxu0 0.0
    %870 = vmatprep.subr.mxu0 0.0
    %871 = vmatpush1.msra.mxu0 0.0
    %872 = vmatprep.subr.mxu0 0.0
    %873 = vmatpush1.msra.mxu0 0.0
    %874 = vmatprep.subr.mxu0 0.0
    %875 = vmatpush1.msra.mxu0 0.0
    %876 = vmatprep.subr.mxu0 0.0
    %877 = vmatpush1.msra.mxu0 0.0
    %878 = vmatprep.subr.mxu0 0.0
    %879 = vmatpush1.msra.mxu0 0.0
    %880 = vmatprep.subr.mxu0 0.0
    %881 = vmatpush1.msra.mxu0 0.0
    %882 = vmatprep.subr.mxu0 0.0
    %883 = vmatpush1.msra.mxu0 0.0
    %884 = vmatprep.subr.mxu0 0.0
    %885 = vmatpush1.msra.mxu0 0.0
    %886 = vmatprep.subr.mxu0 0.0
    %887 = vmatpush1.msra.mxu0 0.0
    %888 = vmatprep.subr.mxu0 0.0
    %889 = vmatpush1.msra.mxu0 0.0
    %890 = vmatprep.subr.mxu0 0.0
    %891 = vmatpush1.msra.mxu0 0.0
    %892 = vmatprep.subr.mxu0 0.0
    %893 = vmatpush1.msra.mxu0 0.0
    %894 = vmatprep.subr.mxu0 0.0
    %895 = vmatpush1.msra.mxu0 0.0
    %896 = vmatprep.mubr.f32.mxu0 0.0
    %897 = vmatmul.mubr.f32.gmra.mrb[0].mxu0 %v759
    %v898 = vpop.f32.mrb[0].mxu0
    %v899 = vadd.f32 0.0, %v898
    %v900 = vpop.f32.mrb[0].mxu0
    %901 = vdwg.mxu0
    %v903 = vrot.slane %v828, 2
    %v905 = vadd.f32 %v131, %v903
    %v906 = vxor.u32 %v905, 2147483648
    %v907 = vmul.f32 %v906, 1.442695
    %v908 = vpow.pop %v907
    %v909 = vadd.f32 %v908, 1.0
    %v910 = vrcp.pop %v909
    %v911 = vmul.f32 1.0, %v910
    %v912 = vadd.f32 %v828, %v275
    %v914 = vrot.slane %v912, 2
    %915 = vrot.lane.b32.xlu0 %v914, 64
    %v916 = vpop.permute.xlu0 %915
    %v918 = vmul.f32 %v911, %v916
    %920 = vrot.lane.b32.xlu0 %v918, 64
    %v921 = vpop.permute.xlu0 %920
    %v923 = vadd.f32 %v131, %v921
    %v924 = vtanh.pop %v923
    %v925 = vsub.f32 1.0, %v911
    %927 = vrot.lane.b32.xlu0 %v924, 96
    %v928 = vpop.permute.xlu0 %927
    %v930 = vmul.f32 %v925, %v928
    %v932 = vrot.slane %v721, 2
    %933 = vrot.lane.b32.xlu0 %v932, 32
    %v934 = vpop.permute.xlu0 %933
    %v936 = vmul.f32 %v911, %v934
    %v937 = vadd.f32 %v930, %v936
    %v939 = vrot.slane %v937, 6
    %940 = vrot.lane.b32.xlu0 %v939, 96
    %v941 = vpop.permute.xlu0 %940
    %v943 = vsel %vm183, %v941, 0.0
    %v944 = vsel %vm183, %v941, %v721
    %v945 = vadd.f32 %v899, %v495
    %v946 = vadd.f32 %v945, %v830
    %v947 = vxor.u32 %v946, 2147483648
    %v948 = vmul.f32 %v947, 1.442695
    %v949 = vpow.pop %v948
    %v950 = vadd.f32 %v949, 1.0
    %v951 = vrcp.pop %v950
    %v952 = vmul.f32 1.0, %v951
    %v953 = vadd.f32 %v830, %v506
    %955 = vrot.lane.b32.xlu0 %v953, 64
    %v956 = vpop.permute.xlu0 %955
    %v958 = vmul.f32 %v952, %v956
    %960 = vrot.lane.b32.xlu0 %v958, 64
    %v961 = vpop.permute.xlu0 %960
    %v963 = vadd.f32 %v945, %v961
    %v964 = vtanh.pop %v963
    %v965 = vsub.f32 1.0, %v952
    %967 = vrot.lane.b32.xlu0 %v964, 96
    %v968 = vpop.permute.xlu0 %967
    %v970 = vmul.f32 %v965, %v968
    %v971 = vmul.f32 %v952, %v751
    %v972 = vadd.f32 %v970, %v971
    %v973 = vsel %vm182, %v972, 0.0
    %v974 = vsel %vm182, %v972, %v751
    %976 = vrot.lane.b32.xlu0 %v943, 64
    %v977 = vpop.permute.xlu0 %976
    %v979 = vsel %vm57, %v944, %v974
    %v980 = vsel %vm306, %v979, %v977
    %v982 = vsel %vm188, %v980, 0
    %984 = vmatprep.subr.mxu0 %v140
    %985 = vmatpush1.msra.mxu0 %v139
    %986 = vmatprep.subr.mxu0 %v143
    %987 = vmatpush1.msra.mxu0 %v142
    %988 = vmatprep.subr.mxu0 %v146
    %989 = vmatpush1.msra.mxu0 %v145
    %990 = vmatprep.subr.mxu0 %v149
    %991 = vmatpush1.msra.mxu0 %v148
    %992 = vmatprep.subr.mxu0 %v152
    %993 = vmatpush1.msra.mxu0 %v151
    %994 = vmatprep.subr.mxu0 %v155
    %995 = vmatpush1.msra.mxu0 %v154
    %996 = vmatprep.subr.mxu0 %v158
    %997 = vmatpush1.msra.mxu0 %v157
    %998 = vmatprep.subr.mxu0 %v161
    %999 = vmatpush1.msra.mxu0 %v160
    %1000 = vmatprep.subr.mxu0 %v164
    %1001 = vmatpush1.msra.mxu0 %v163
    %1002 = vmatprep.subr.mxu0 %v167
    %1003 = vmatpush1.msra.mxu0 %v166
    %1004 = vmatprep.subr.mxu0 %v170
    %1005 = vmatpush1.msra.mxu0 %v169
    %1006 = vmatprep.subr.mxu0 %v173
    %1007 = vmatpush1.msra.mxu0 %v172
    %1008 = vmatprep.subr.mxu0 0.0
    %1009 = vmatpush1.msra.mxu0 0.0
    %1010 = vmatprep.subr.mxu0 0.0
    %1011 = vmatpush1.msra.mxu0 0.0
    %1012 = vmatprep.subr.mxu0 0.0
    %1013 = vmatpush1.msra.mxu0 0.0
    %1014 = vmatprep.subr.mxu0 0.0
    %1015 = vmatpush1.msra.mxu0 0.0
    %1016 = vmatprep.subr.mxu0 0.0
    %1017 = vmatpush1.msra.mxu0 0.0
    %1018 = vmatprep.subr.mxu0 0.0
    %1019 = vmatpush1.msra.mxu0 0.0
    %1020 = vmatprep.subr.mxu0 0.0
    %1021 = vmatpush1.msra.mxu0 0.0
    %1022 = vmatprep.subr.mxu0 0.0
    %1023 = vmatpush1.msra.mxu0 0.0
    %1024 = vmatprep.subr.mxu0 0.0
    %1025 = vmatpush1.msra.mxu0 0.0
    %1026 = vmatprep.subr.mxu0 0.0
    %1027 = vmatpush1.msra.mxu0 0.0
    %1028 = vmatprep.subr.mxu0 0.0
    %1029 = vmatpush1.msra.mxu0 0.0
    %1030 = vmatprep.subr.mxu0 0.0
    %1031 = vmatpush1.msra.mxu0 0.0
    %1032 = vmatprep.subr.mxu0 0.0
    %1033 = vmatpush1.msra.mxu0 0.0
    %1034 = vmatprep.subr.mxu0 0.0
    %1035 = vmatpush1.msra.mxu0 0.0
    %1036 = vmatprep.subr.mxu0 0.0
    %1037 = vmatpush1.msra.mxu0 0.0
    %1038 = vmatprep.subr.mxu0 0.0
    %1039 = vmatpush1.msra.mxu0 0.0
    %1040 = vmatprep.subr.mxu0 0.0
    %1041 = vmatpush1.msra.mxu0 0.0
    %1042 = vmatprep.subr.mxu0 0.0
    %1043 = vmatpush1.msra.mxu0 0.0
    %1044 = vmatprep.subr.mxu0 0.0
    %1045 = vmatpush1.msra.mxu0 0.0
    %1046 = vmatprep.subr.mxu0 0.0
    %1047 = vmatpush1.msra.mxu0 0.0
    %1048 = vmatprep.mubr.f32.mxu0 0.0
    %1049 = vmatmul.mubr.f32.gmra.mrb[0].mxu0 %v982
    %v1050 = vpop.f32.mrb[0].mxu0
    %v1051 = vadd.f32 0.0, %v1050
    %v1052 = vpop.f32.mrb[0].mxu0
    %v1053 = vadd.f32 0.0, %v1052
    %1054 = vdwg.mxu0
    %1055 = vmatprep.subr.mxu0 0.0
    %1056 = vmatpush1.msra.mxu0 %v141
    %1057 = vmatprep.subr.mxu0 0.0
    %1058 = vmatpush1.msra.mxu0 %v144
    %1059 = vmatprep.subr.mxu0 0.0
    %1060 = vmatpush1.msra.mxu0 %v147
    %1061 = vmatprep.subr.mxu0 0.0
    %1062 = vmatpush1.msra.mxu0 %v150
    %1063 = vmatprep.subr.mxu0 0.0
    %1064 = vmatpush1.msra.mxu0 %v153
    %1065 = vmatprep.subr.mxu0 0.0
    %1066 = vmatpush1.msra.mxu0 %v156
    %1067 = vmatprep.subr.mxu0 0.0
    %1068 = vmatpush1.msra.mxu0 %v159
    %1069 = vmatprep.subr.mxu0 0.0
    %1070 = vmatpush1.msra.mxu0 %v162
    %1071 = vmatprep.subr.mxu0 0.0
    %1072 = vmatpush1.msra.mxu0 %v165
    %1073 = vmatprep.subr.mxu0 0.0
    %1074 = vmatpush1.msra.mxu0 %v168
    %1075 = vmatprep.subr.mxu0 0.0
    %1076 = vmatpush1.msra.mxu0 %v171
    %1077 = vmatprep.subr.mxu0 0.0
    %1078 = vmatpush1.msra.mxu0 %v174
    %1079 = vmatprep.subr.mxu0 0.0
    %1080 = vmatpush1.msra.mxu0 0.0
    %1081 = vmatprep.subr.mxu0 0.0
    %1082 = vmatpush1.msra.mxu0 0.0
    %1083 = vmatprep.subr.mxu0 0.0
    %1084 = vmatpush1.msra.mxu0 0.0
    %1085 = vmatprep.subr.mxu0 0.0
    %1086 = vmatpush1.msra.mxu0 0.0
    %1087 = vmatprep.subr.mxu0 0.0
    %1088 = vmatpush1.msra.mxu0 0.0
    %1089 = vmatprep.subr.mxu0 0.0
    %1090 = vmatpush1.msra.mxu0 0.0
    %1091 = vmatprep.subr.mxu0 0.0
    %1092 = vmatpush1.msra.mxu0 0.0
    %1093 = vmatprep.subr.mxu0 0.0
    %1094 = vmatpush1.msra.mxu0 0.0
    %1095 = vmatprep.subr.mxu0 0.0
    %1096 = vmatpush1.msra.mxu0 0.0
    %1097 = vmatprep.subr.mxu0 0.0
    %1098 = vmatpush1.msra.mxu0 0.0
    %1099 = vmatprep.subr.mxu0 0.0
    %1100 = vmatpush1.msra.mxu0 0.0
    %1101 = vmatprep.subr.mxu0 0.0
    %1102 = vmatpush1.msra.mxu0 0.0
    %1103 = vmatprep.subr.mxu0 0.0
    %1104 = vmatpush1.msra.mxu0 0.0
    %1105 = vmatprep.subr.mxu0 0.0
    %1106 = vmatpush1.msra.mxu0 0.0
    %1107 = vmatprep.subr.mxu0 0.0
    %1108 = vmatpush1.msra.mxu0 0.0
    %1109 = vmatprep.subr.mxu0 0.0
    %1110 = vmatpush1.msra.mxu0 0.0
    %1111 = vmatprep.subr.mxu0 0.0
    %1112 = vmatpush1.msra.mxu0 0.0
    %1113 = vmatprep.subr.mxu0 0.0
    %1114 = vmatpush1.msra.mxu0 0.0
    %1115 = vmatprep.subr.mxu0 0.0
    %1116 = vmatpush1.msra.mxu0 0.0
    %1117 = vmatprep.subr.mxu0 0.0
    %1118 = vmatpush1.msra.mxu0 0.0
    %1119 = vmatprep.mubr.f32.mxu0 0.0
    %1120 = vmatmul.mubr.f32.gmra.mrb[0].mxu0 %v982
    %v1121 = vpop.f32.mrb[0].mxu0
    %v1122 = vadd.f32 0.0, %v1121
    %v1123 = vpop.f32.mrb[0].mxu0
    %1124 = vdwg.mxu0
    %v1125 = vadd.f32 %v136, %v1051
    %v1126 = vxor.u32 %v1125, 2147483648
    %v1127 = vmul.f32 %v1126, 1.442695
    %v1128 = vpow.pop %v1127
    %v1129 = vadd.f32 %v1128, 1.0
    %v1130 = vrcp.pop %v1129
    %v1131 = vmul.f32 1.0, %v1130
    %v1132 = vadd.f32 %v1051, %v275
    %1134 = vrot.lane.b32.xlu0 %v1132, 64
    %v1135 = vpop.permute.xlu0 %1134
    %v1137 = vmul.f32 %v1131, %v1135
    %1139 = vrot.lane.b32.xlu0 %v1137, 64
    %v1140 = vpop.permute.xlu0 %1139
    %v1142 = vadd.f32 %v136, %v1140
    %v1143 = vtanh.pop %v1142
    %v1144 = vsub.f32 1.0, %v1131
    %1146 = vrot.lane.b32.xlu0 %v1143, 96
    %v1147 = vpop.permute.xlu0 %1146
    %v1149 = vmul.f32 %v1144, %v1147
    %1151 = vrot.lane.b32.xlu0 %v944, 32
    %v1152 = vpop.permute.xlu0 %1151
    %v1154 = vmul.f32 %v1131, %v1152
    %v1155 = vadd.f32 %v1149, %v1154
    %v1156 = vsel %vm184, %v1155, 0.0
    %v1157 = vsel %vm184, %v1155, %v1152
    %v1158 = vadd.f32 %v1122, %v495
    %v1159 = vadd.f32 %v1158, %v1053
    %v1160 = vxor.u32 %v1159, 2147483648
    %v1161 = vmul.f32 %v1160, 1.442695
    %v1162 = vpow.pop %v1161
    %v1163 = vadd.f32 %v1162, 1.0
    %v1164 = vrcp.pop %v1163
    %v1165 = vmul.f32 1.0, %v1164
    %v1166 = vadd.f32 %v1053, %v506
    %1168 = vrot.lane.b32.xlu0 %v1166, 64
    %v1169 = vpop.permute.xlu0 %1168
    %v1171 = vmul.f32 %v1165, %v1169
    %1173 = vrot.lane.b32.xlu0 %v1171, 64
    %v1174 = vpop.permute.xlu0 %1173
    %v1176 = vadd.f32 %v1158, %v1174
    %v1177 = vtanh.pop %v1176
    %v1178 = vsub.f32 1.0, %v1165
    %1180 = vrot.lane.b32.xlu0 %v1177, 96
    %v1181 = vpop.permute.xlu0 %1180
    %v1183 = vmul.f32 %v1178, %v1181
    %v1184 = vmul.f32 %v1165, %v974
    %v1185 = vadd.f32 %v1183, %v1184
    %v1186 = vsel %vm183, %v1185, 0.0
    %v1187 = vsel %vm183, %v1185, %v974
    %1189 = vrot.lane.b32.xlu0 %v1157, 96
    %v1190 = vpop.permute.xlu0 %1189
    %1193 = vrot.lane.b32.xlu0 %v1156, 32
    %v1194 = vpop.permute.xlu0 %1193
    %v1196 = vsel %vm57, %v1190, %v1187
    %v1197 = vsel %vm306, %v1196, %v1194
    %v1199 = vsel %vm188, %v1197, 0
    %1201 = vmatprep.subr.mxu0 %v140
    %1202 = vmatpush1.msra.mxu0 %v139
    %1203 = vmatprep.subr.mxu0 %v143
    %1204 = vmatpush1.msra.mxu0 %v142
    %1205 = vmatprep.subr.mxu0 %v146
    %1206 = vmatpush1.msra.mxu0 %v145
    %1207 = vmatprep.subr.mxu0 %v149
    %1208 = vmatpush1.msra.mxu0 %v148
    %1209 = vmatprep.subr.mxu0 %v152
    %1210 = vmatpush1.msra.mxu0 %v151
    %1211 = vmatprep.subr.mxu0 %v155
    %1212 = vmatpush1.msra.mxu0 %v154
    %1213 = vmatprep.subr.mxu0 %v158
    %1214 = vmatpush1.msra.mxu0 %v157
    %1215 = vmatprep.subr.mxu0 %v161
    %1216 = vmatpush1.msra.mxu0 %v160
    %1217 = vmatprep.subr.mxu0 %v164
    %1218 = vmatpush1.msra.mxu0 %v163
    %1219 = vmatprep.subr.mxu0 %v167
    %1220 = vmatpush1.msra.mxu0 %v166
    %1221 = vmatprep.subr.mxu0 %v170
    %1222 = vmatpush1.msra.mxu0 %v169
    %1223 = vmatprep.subr.mxu0 %v173
    %1224 = vmatpush1.msra.mxu0 %v172
    %1225 = vmatprep.subr.mxu0 0.0
    %1226 = vmatpush1.msra.mxu0 0.0
    %1227 = vmatprep.subr.mxu0 0.0
    %1228 = vmatpush1.msra.mxu0 0.0
    %1229 = vmatprep.subr.mxu0 0.0
    %1230 = vmatpush1.msra.mxu0 0.0
    %1231 = vmatprep.subr.mxu0 0.0
    %1232 = vmatpush1.msra.mxu0 0.0
    %1233 = vmatprep.subr.mxu0 0.0
    %1234 = vmatpush1.msra.mxu0 0.0
    %1235 = vmatprep.subr.mxu0 0.0
    %1236 = vmatpush1.msra.mxu0 0.0
    %1237 = vmatprep.subr.mxu0 0.0
    %1238 = vmatpush1.msra.mxu0 0.0
    %1239 = vmatprep.subr.mxu0 0.0
    %1240 = vmatpush1.msra.mxu0 0.0
    %1241 = vmatprep.subr.mxu0 0.0
    %1242 = vmatpush1.msra.mxu0 0.0
    %1243 = vmatprep.subr.mxu0 0.0
    %1244 = vmatpush1.msra.mxu0 0.0
    %1245 = vmatprep.subr.mxu0 0.0
    %1246 = vmatpush1.msra.mxu0 0.0
    %1247 = vmatprep.subr.mxu0 0.0
    %1248 = vmatpush1.msra.mxu0 0.0
    %1249 = vmatprep.subr.mxu0 0.0
    %1250 = vmatpush1.msra.mxu0 0.0
    %1251 = vmatprep.subr.mxu0 0.0
    %1252 = vmatpush1.msra.mxu0 0.0
    %1253 = vmatprep.subr.mxu0 0.0
    %1254 = vmatpush1.msra.mxu0 0.0
    %1255 = vmatprep.subr.mxu0 0.0
    %1256 = vmatpush1.msra.mxu0 0.0
    %1257 = vmatprep.subr.mxu0 0.0
    %1258 = vmatpush1.msra.mxu0 0.0
    %1259 = vmatprep.subr.mxu0 0.0
    %1260 = vmatpush1.msra.mxu0 0.0
    %1261 = vmatprep.subr.mxu0 0.0
    %1262 = vmatpush1.msra.mxu0 0.0
    %1263 = vmatprep.subr.mxu0 0.0
    %1264 = vmatpush1.msra.mxu0 0.0
    %1265 = vmatprep.mubr.f32.mxu0 0.0
    %1266 = vmatmul.mubr.f32.gmra.mrb[0].mxu0 %v1199
    %v1267 = vpop.f32.mrb[0].mxu0
    %v1268 = vadd.f32 0.0, %v1267
    %v1269 = vpop.f32.mrb[0].mxu0
    %v1270 = vadd.f32 0.0, %v1269
    %1271 = vdwg.mxu0
    %1272 = vmatprep.subr.mxu0 0.0
    %1273 = vmatpush1.msra.mxu0 %v141
    %1274 = vmatprep.subr.mxu0 0.0
    %1275 = vmatpush1.msra.mxu0 %v144
    %1276 = vmatprep.subr.mxu0 0.0
    %1277 = vmatpush1.msra.mxu0 %v147
    %1278 = vmatprep.subr.mxu0 0.0
    %1279 = vmatpush1.msra.mxu0 %v150
    %1280 = vmatprep.subr.mxu0 0.0
    %1281 = vmatpush1.msra.mxu0 %v153
    %1282 = vmatprep.subr.mxu0 0.0
    %1283 = vmatpush1.msra.mxu0 %v156
    %1284 = vmatprep.subr.mxu0 0.0
    %1285 = vmatpush1.msra.mxu0 %v159
    %1286 = vmatprep.subr.mxu0 0.0
    %1287 = vmatpush1.msra.mxu0 %v162
    %1288 = vmatprep.subr.mxu0 0.0
    %1289 = vmatpush1.msra.mxu0 %v165
    %1290 = vmatprep.subr.mxu0 0.0
    %1291 = vmatpush1.msra.mxu0 %v168
    %1292 = vmatprep.subr.mxu0 0.0
    %1293 = vmatpush1.msra.mxu0 %v171
    %1294 = vmatprep.subr.mxu0 0.0
    %1295 = vmatpush1.msra.mxu0 %v174
    %1296 = vmatprep.subr.mxu0 0.0
    %1297 = vmatpush1.msra.mxu0 0.0
    %1298 = vmatprep.subr.mxu0 0.0
    %1299 = vmatpush1.msra.mxu0 0.0
    %1300 = vmatprep.subr.mxu0 0.0
    %1301 = vmatpush1.msra.mxu0 0.0
    %1302 = vmatprep.subr.mxu0 0.0
    %1303 = vmatpush1.msra.mxu0 0.0
    %1304 = vmatprep.subr.mxu0 0.0
    %1305 = vmatpush1.msra.mxu0 0.0
    %1306 = vmatprep.subr.mxu0 0.0
    %1307 = vmatpush1.msra.mxu0 0.0
    %1308 = vmatprep.subr.mxu0 0.0
    %1309 = vmatpush1.msra.mxu0 0.0
    %1310 = vmatprep.subr.mxu0 0.0
    %1311 = vmatpush1.msra.mxu0 0.0
    %1312 = vmatprep.subr.mxu0 0.0
    %1313 = vmatpush1.msra.mxu0 0.0
    %1314 = vmatprep.subr.mxu0 0.0
    %1315 = vmatpush1.msra.mxu0 0.0
    %1316 = vmatprep.subr.mxu0 0.0
    %1317 = vmatpush1.msra.mxu0 0.0
    %1318 = vmatprep.subr.mxu0 0.0
    %1319 = vmatpush1.msra.mxu0 0.0
    %1320 = vmatprep.subr.mxu0 0.0
    %1321 = vmatpush1.msra.mxu0 0.0
    %1322 = vmatprep.subr.mxu0 0.0
    %1323 = vmatpush1.msra.mxu0 0.0
    %1324 = vmatprep.subr.mxu0 0.0
    %1325 = vmatpush1.msra.mxu0 0.0
    %1326 = vmatprep.subr.mxu0 0.0
    %1327 = vmatpush1.msra.mxu0 0.0
    %1328 = vmatprep.subr.mxu0 0.0
    %1329 = vmatpush1.msra.mxu0 0.0
    %1330 = vmatprep.subr.mxu0 0.0
    %1331 = vmatpush1.msra.mxu0 0.0
    %1332 = vmatprep.subr.mxu0 0.0
    %1333 = vmatpush1.msra.mxu0 0.0
    %1334 = vmatprep.subr.mxu0 0.0
    %1335 = vmatpush1.msra.mxu0 0.0
    %1336 = vmatprep.mubr.f32.mxu0 0.0
    %1337 = vmatmul.mubr.f32.gmra.mrb[0].mxu0 %v1199
    %v1338 = vpop.f32.mrb[0].mxu0
    %v1339 = vadd.f32 0.0, %v1338
    %v1340 = vpop.f32.mrb[0].mxu0
    %1341 = vdwg.mxu0
    %v1343 = vrot.slane %v1268, 6
    %v1345 = vadd.f32 %v136, %v1343
    %v1346 = vxor.u32 %v1345, 2147483648
    %v1347 = vmul.f32 %v1346, 1.442695
    %v1348 = vpow.pop %v1347
    %v1349 = vadd.f32 %v1348, 1.0
    %v1350 = vrcp.pop %v1349
    %v1351 = vmul.f32 1.0, %v1350
    %v1352 = vadd.f32 %v1268, %v275
    %v1354 = vrot.slane %v1352, 6
    %1355 = vrot.lane.b32.xlu0 %v1354, 64
    %v1356 = vpop.permute.xlu0 %1355
    %v1358 = vmul.f32 %v1351, %v1356
    %1360 = vrot.lane.b32.xlu0 %v1358, 64
    %v1361 = vpop.permute.xlu0 %1360
    %v1363 = vadd.f32 %v136, %v1361
    %v1364 = vtanh.pop %v1363
    %v1365 = vsub.f32 1.0, %v1351
    %1367 = vrot.lane.b32.xlu0 %v1364, 96
    %v1368 = vpop.permute.xlu0 %1367
    %v1370 = vmul.f32 %v1365, %v1368
    %v1371 = vrot.slane %v1157, 6
    %v1373 = vmul.f32 %v1351, %v1371
    %v1374 = vadd.f32 %v1370, %v1373
    %v1376 = vrot.slane %v1374, 2
    %1377 = vrot.lane.b32.xlu0 %v1376, 96
    %v1378 = vpop.permute.xlu0 %1377
    %v1380 = vsel %vm185, %v1378, 0.0
    %v1381 = vsel %vm185, %v1378, %v1190
    %v1382 = vadd.f32 %v1339, %v495
    %v1383 = vadd.f32 %v1382, %v1270
    %v1384 = vxor.u32 %v1383, 2147483648
    %v1385 = vmul.f32 %v1384, 1.442695
    %v1386 = vpow.pop %v1385
    %v1387 = vadd.f32 %v1386, 1.0
    %v1388 = vrcp.pop %v1387
    %v1389 = vmul.f32 1.0, %v1388
    %v1390 = vadd.f32 %v1270, %v506
    %1392 = vrot.lane.b32.xlu0 %v1390, 64
    %v1393 = vpop.permute.xlu0 %1392
    %v1395 = vmul.f32 %v1389, %v1393
    %1397 = vrot.lane.b32.xlu0 %v1395, 64
    %v1398 = vpop.permute.xlu0 %1397
    %v1400 = vadd.f32 %v1382, %v1398
    %v1401 = vtanh.pop %v1400
    %v1402 = vsub.f32 1.0, %v1389
    %1404 = vrot.lane.b32.xlu0 %v1401, 96
    %v1405 = vpop.permute.xlu0 %1404
    %v1407 = vmul.f32 %v1402, %v1405
    %v1408 = vmul.f32 %v1389, %v1187
    %v1409 = vadd.f32 %v1407, %v1408
    %v1410 = vsel %vm184, %v1409, 0.0
    %v1411 = vsel %vm184, %v1409, %v1187
    %1413 = vrot.lane.b32.xlu0 %v1380, 64
    %v1414 = vpop.permute.xlu0 %1413
    %v1416 = vsel %vm57, %v1381, %v1411
    %v1417 = vsel %vm306, %v1416, %v1414
    %v1419 = vsel %vm188, %v1417, 0
    %1421 = vmatprep.subr.mxu0 %v140
    %1422 = vmatpush1.msra.mxu0 %v139
    %1423 = vmatprep.subr.mxu0 %v143
    %1424 = vmatpush1.msra.mxu0 %v142
    %1425 = vmatprep.subr.mxu0 %v146
    %1426 = vmatpush1.msra.mxu0 %v145
    %1427 = vmatprep.subr.mxu0 %v149
    %1428 = vmatpush1.msra.mxu0 %v148
    %1429 = vmatprep.subr.mxu0 %v152
    %1430 = vmatpush1.msra.mxu0 %v151
    %1431 = vmatprep.subr.mxu0 %v155
    %1432 = vmatpush1.msra.mxu0 %v154
    %1433 = vmatprep.subr.mxu0 %v158
    %1434 = vmatpush1.msra.mxu0 %v157
    %1435 = vmatprep.subr.mxu0 %v161
    %1436 = vmatpush1.msra.mxu0 %v160
    %1437 = vmatprep.subr.mxu0 %v164
    %1438 = vmatpush1.msra.mxu0 %v163
    %1439 = vmatprep.subr.mxu0 %v167
    %1440 = vmatpush1.msra.mxu0 %v166
    %1441 = vmatprep.subr.mxu0 %v170
    %1442 = vmatpush1.msra.mxu0 %v169
    %1443 = vmatprep.subr.mxu0 %v173
    %1444 = vmatpush1.msra.mxu0 %v172
    %1445 = vmatprep.subr.mxu0 0.0
    %1446 = vmatpush1.msra.mxu0 0.0
    %1447 = vmatprep.subr.mxu0 0.0
    %1448 = vmatpush1.msra.mxu0 0.0
    %1449 = vmatprep.subr.mxu0 0.0
    %1450 = vmatpush1.msra.mxu0 0.0
    %1451 = vmatprep.subr.mxu0 0.0
    %1452 = vmatpush1.msra.mxu0 0.0
    %1453 = vmatprep.subr.mxu0 0.0
    %1454 = vmatpush1.msra.mxu0 0.0
    %1455 = vmatprep.subr.mxu0 0.0
    %1456 = vmatpush1.msra.mxu0 0.0
    %1457 = vmatprep.subr.mxu0 0.0
    %1458 = vmatpush1.msra.mxu0 0.0
    %1459 = vmatprep.subr.mxu0 0.0
    %1460 = vmatpush1.msra.mxu0 0.0
    %1461 = vmatprep.subr.mxu0 0.0
    %1462 = vmatpush1.msra.mxu0 0.0
    %1463 = vmatprep.subr.mxu0 0.0
    %1464 = vmatpush1.msra.mxu0 0.0
    %1465 = vmatprep.subr.mxu0 0.0
    %1466 = vmatpush1.msra.mxu0 0.0
    %1467 = vmatprep.subr.mxu0 0.0
    %1468 = vmatpush1.msra.mxu0 0.0
    %1469 = vmatprep.subr.mxu0 0.0
    %1470 = vmatpush1.msra.mxu0 0.0
    %1471 = vmatprep.subr.mxu0 0.0
    %1472 = vmatpush1.msra.mxu0 0.0
    %1473 = vmatprep.subr.mxu0 0.0
    %1474 = vmatpush1.msra.mxu0 0.0
    %1475 = vmatprep.subr.mxu0 0.0
    %1476 = vmatpush1.msra.mxu0 0.0
    %1477 = vmatprep.subr.mxu0 0.0
    %1478 = vmatpush1.msra.mxu0 0.0
    %1479 = vmatprep.subr.mxu0 0.0
    %1480 = vmatpush1.msra.mxu0 0.0
    %1481 = vmatprep.subr.mxu0 0.0
    %1482 = vmatpush1.msra.mxu0 0.0
    %1483 = vmatprep.subr.mxu0 0.0
    %1484 = vmatpush1.msra.mxu0 0.0
    %1485 = vmatprep.mubr.f32.mxu0 0.0
    %1486 = vmatmul.mubr.f32.gmra.mrb[0].mxu0 %v1419
    %v1487 = vpop.f32.mrb[0].mxu0
    %v1488 = vadd.f32 0.0, %v1487
    %v1489 = vpop.f32.mrb[0].mxu0
    %v1490 = vadd.f32 0.0, %v1489
    %1491 = vdwg.mxu0
    %1492 = vmatprep.subr.mxu0 0.0
    %1493 = vmatpush1.msra.mxu0 %v141
    %1494 = vmatprep.subr.mxu0 0.0
    %1495 = vmatpush1.msra.mxu0 %v144
    %1496 = vmatprep.subr.mxu0 0.0
    %1497 = vmatpush1.msra.mxu0 %v147
    %1498 = vmatprep.subr.mxu0 0.0
    %1499 = vmatpush1.msra.mxu0 %v150
    %1500 = vmatprep.subr.mxu0 0.0
    %1501 = vmatpush1.msra.mxu0 %v153
    %1502 = vmatprep.subr.mxu0 0.0
    %1503 = vmatpush1.msra.mxu0 %v156
    %1504 = vmatprep.subr.mxu0 0.0
    %1505 = vmatpush1.msra.mxu0 %v159
    %1506 = vmatprep.subr.mxu0 0.0
    %1507 = vmatpush1.msra.mxu0 %v162
    %1508 = vmatprep.subr.mxu0 0.0
    %1509 = vmatpush1.msra.mxu0 %v165
    %1510 = vmatprep.subr.mxu0 0.0
    %1511 = vmatpush1.msra.mxu0 %v168
    %1512 = vmatprep.subr.mxu0 0.0
    %1513 = vmatpush1.msra.mxu0 %v171
    %1514 = vmatprep.subr.mxu0 0.0
    %1515 = vmatpush1.msra.mxu0 %v174
    %1516 = vmatprep.subr.mxu0 0.0
    %1517 = vmatpush1.msra.mxu0 0.0
    %1518 = vmatprep.subr.mxu0 0.0
    %1519 = vmatpush1.msra.mxu0 0.0
    %1520 = vmatprep.subr.mxu0 0.0
    %1521 = vmatpush1.msra.mxu0 0.0
    %1522 = vmatprep.subr.mxu0 0.0
    %1523 = vmatpush1.msra.mxu0 0.0
    %1524 = vmatprep.subr.mxu0 0.0
    %1525 = vmatpush1.msra.mxu0 0.0
    %1526 = vmatprep.subr.mxu0 0.0
    %1527 = vmatpush1.msra.mxu0 0.0
    %1528 = vmatprep.subr.mxu0 0.0
    %1529 = vmatpush1.msra.mxu0 0.0
    %1530 = vmatprep.subr.mxu0 0.0
    %1531 = vmatpush1.msra.mxu0 0.0
    %1532 = vmatprep.subr.mxu0 0.0
    %1533 = vmatpush1.msra.mxu0 0.0
    %1534 = vmatprep.subr.mxu0 0.0
    %1535 = vmatpush1.msra.mxu0 0.0
    %1536 = vmatprep.subr.mxu0 0.0
    %1537 = vmatpush1.msra.mxu0 0.0
    %1538 = vmatprep.subr.mxu0 0.0
    %1539 = vmatpush1.msra.mxu0 0.0
    %1540 = vmatprep.subr.mxu0 0.0
    %1541 = vmatpush1.msra.mxu0 0.0
    %1542 = vmatprep.subr.mxu0 0.0
    %1543 = vmatpush1.msra.mxu0 0.0
    %1544 = vmatprep.subr.mxu0 0.0
    %1545 = vmatpush1.msra.mxu0 0.0
    %1546 = vmatprep.subr.mxu0 0.0
    %1547 = vmatpush1.msra.mxu0 0.0
    %1548 = vmatprep.subr.mxu0 0.0
    %1549 = vmatpush1.msra.mxu0 0.0
    %1550 = vmatprep.subr.mxu0 0.0
    %1551 = vmatpush1.msra.mxu0 0.0
    %1552 = vmatprep.subr.mxu0 0.0
    %1553 = vmatpush1.msra.mxu0 0.0
    %1554 = vmatprep.subr.mxu0 0.0
    %1555 = vmatpush1.msra.mxu0 0.0
    %1556 = vmatprep.mubr.f32.mxu0 0.0
    %1557 = vmatmul.mubr.f32.gmra.mrb[0].mxu0 %v1419
    %v1558 = vpop.f32.mrb[0].mxu0
    %v1559 = vadd.f32 0.0, %v1558
    %v1560 = vpop.f32.mrb[0].mxu0
    %1561 = vdwg.mxu0
    %v1563 = vrot.slane %v1488, 4
    %v1565 = vadd.f32 %v136, %v1563
    %v1566 = vxor.u32 %v1565, 2147483648
    %v1567 = vmul.f32 %v1566, 1.442695
    %v1568 = vpow.pop %v1567
    %v1569 = vadd.f32 %v1568, 1.0
    %v1570 = vrcp.pop %v1569
    %v1571 = vmul.f32 1.0, %v1570
    %v1572 = vadd.f32 %v1488, %v275
    %v1574 = vrot.slane %v1572, 4
    %1575 = vrot.lane.b32.xlu0 %v1574, 64
    %v1576 = vpop.permute.xlu0 %1575
    %v1578 = vmul.f32 %v1571, %v1576
    %1580 = vrot.lane.b32.xlu0 %v1578, 64
    %v1581 = vpop.permute.xlu0 %1580
    %v1583 = vadd.f32 %v136, %v1581
    %v1584 = vtanh.pop %v1583
    %v1585 = vsub.f32 1.0, %v1571
    %1587 = vrot.lane.b32.xlu0 %v1584, 96
    %v1588 = vpop.permute.xlu0 %1587
    %v1590 = vmul.f32 %v1585, %v1588
    %v1592 = vrot.slane %v1381, 4
    %1593 = vrot.lane.b32.xlu0 %v1592, 32
    %v1594 = vpop.permute.xlu0 %1593
    %v1596 = vmul.f32 %v1571, %v1594
    %v1597 = vadd.f32 %v1590, %v1596
    %v1599 = vrot.slane %v1597, 4
    %1600 = vrot.lane.b32.xlu0 %v1599, 96
    %v1601 = vpop.permute.xlu0 %1600
    %v1603 = vsel %vm186, %v1601, 0.0
    %v1604 = vsel %vm186, %v1601, %v1381
    %v1605 = vadd.f32 %v1559, %v495
    %v1606 = vadd.f32 %v1605, %v1490
    %v1607 = vxor.u32 %v1606, 2147483648
    %v1608 = vmul.f32 %v1607, 1.442695
    %v1609 = vpow.pop %v1608
    %v1610 = vadd.f32 %v1609, 1.0
    %v1611 = vrcp.pop %v1610
    %v1612 = vmul.f32 1.0, %v1611
    %v1613 = vadd.f32 %v1490, %v506
    %1615 = vrot.lane.b32.xlu0 %v1613, 64
    %v1616 = vpop.permute.xlu0 %1615
    %v1618 = vmul.f32 %v1612, %v1616
    %1620 = vrot.lane.b32.xlu0 %v1618, 64
    %v1621 = vpop.permute.xlu0 %1620
    %v1623 = vadd.f32 %v1605, %v1621
    %v1624 = vtanh.pop %v1623
    %v1625 = vsub.f32 1.0, %v1612
    %1627 = vrot.lane.b32.xlu0 %v1624, 96
    %v1628 = vpop.permute.xlu0 %1627
    %v1630 = vmul.f32 %v1625, %v1628
    %v1631 = vmul.f32 %v1612, %v1411
    %v1632 = vadd.f32 %v1630, %v1631
    %v1633 = vsel %vm185, %v1632, 0.0
    %v1634 = vsel %vm185, %v1632, %v1411
    %1636 = vrot.lane.b32.xlu0 %v1603, 64
    %v1637 = vpop.permute.xlu0 %1636
    %v1639 = vsel %vm57, %v1604, %v1634
    %v1640 = vsel %vm306, %v1639, %v1637
    %v1642 = vsel %vm188, %v1640, 0
    %1644 = vmatprep.subr.mxu0 %v140
    %1645 = vmatpush1.msra.mxu0 %v139
    %1646 = vmatprep.subr.mxu0 %v143
    %1647 = vmatpush1.msra.mxu0 %v142
    %1648 = vmatprep.subr.mxu0 %v146
    %1649 = vmatpush1.msra.mxu0 %v145
    %1650 = vmatprep.subr.mxu0 %v149
    %1651 = vmatpush1.msra.mxu0 %v148
    %1652 = vmatprep.subr.mxu0 %v152
    %1653 = vmatpush1.msra.mxu0 %v151
    %1654 = vmatprep.subr.mxu0 %v155
    %1655 = vmatpush1.msra.mxu0 %v154
    %1656 = vmatprep.subr.mxu0 %v158
    %1657 = vmatpush1.msra.mxu0 %v157
    %1658 = vmatprep.subr.mxu0 %v161
    %1659 = vmatpush1.msra.mxu0 %v160
    %1660 = vmatprep.subr.mxu0 %v164
    %1661 = vmatpush1.msra.mxu0 %v163
    %1662 = vmatprep.subr.mxu0 %v167
    %1663 = vmatpush1.msra.mxu0 %v166
    %1664 = vmatprep.subr.mxu0 %v170
    %1665 = vmatpush1.msra.mxu0 %v169
    %1666 = vmatprep.subr.mxu0 %v173
    %1667 = vmatpush1.msra.mxu0 %v172
    %1668 = vmatprep.subr.mxu0 0.0
    %1669 = vmatpush1.msra.mxu0 0.0
    %1670 = vmatprep.subr.mxu0 0.0
    %1671 = vmatpush1.msra.mxu0 0.0
    %1672 = vmatprep.subr.mxu0 0.0
    %1673 = vmatpush1.msra.mxu0 0.0
    %1674 = vmatprep.subr.mxu0 0.0
    %1675 = vmatpush1.msra.mxu0 0.0
    %1676 = vmatprep.subr.mxu0 0.0
    %1677 = vmatpush1.msra.mxu0 0.0
    %1678 = vmatprep.subr.mxu0 0.0
    %1679 = vmatpush1.msra.mxu0 0.0
    %1680 = vmatprep.subr.mxu0 0.0
    %1681 = vmatpush1.msra.mxu0 0.0
    %1682 = vmatprep.subr.mxu0 0.0
    %1683 = vmatpush1.msra.mxu0 0.0
    %1684 = vmatprep.subr.mxu0 0.0
    %1685 = vmatpush1.msra.mxu0 0.0
    %1686 = vmatprep.subr.mxu0 0.0
    %1687 = vmatpush1.msra.mxu0 0.0
    %1688 = vmatprep.subr.mxu0 0.0
    %1689 = vmatpush1.msra.mxu0 0.0
    %1690 = vmatprep.subr.mxu0 0.0
    %1691 = vmatpush1.msra.mxu0 0.0
    %1692 = vmatprep.subr.mxu0 0.0
    %1693 = vmatpush1.msra.mxu0 0.0
    %1694 = vmatprep.subr.mxu0 0.0
    %1695 = vmatpush1.msra.mxu0 0.0
    %1696 = vmatprep.subr.mxu0 0.0
    %1697 = vmatpush1.msra.mxu0 0.0
    %1698 = vmatprep.subr.mxu0 0.0
    %1699 = vmatpush1.msra.mxu0 0.0
    %1700 = vmatprep.subr.mxu0 0.0
    %1701 = vmatpush1.msra.mxu0 0.0
    %1702 = vmatprep.subr.mxu0 0.0
    %1703 = vmatpush1.msra.mxu0 0.0
    %1704 = vmatprep.subr.mxu0 0.0
    %1705 = vmatpush1.msra.mxu0 0.0
    %1706 = vmatprep.subr.mxu0 0.0
    %1707 = vmatpush1.msra.mxu0 0.0
    %1708 = vmatprep.mubr.f32.mxu0 0.0
    %1709 = vmatmul.mubr.f32.gmra.mrb[0].mxu0 %v1642
    %v1710 = vpop.f32.mrb[0].mxu0
    %v1711 = vadd.f32 0.0, %v1710
    %v1712 = vpop.f32.mrb[0].mxu0
    %v1713 = vadd.f32 0.0, %v1712
    %1714 = vdwg.mxu0
    %1715 = vmatprep.subr.mxu0 0.0
    %1716 = vmatpush1.msra.mxu0 %v141
    %1717 = vmatprep.subr.mxu0 0.0
    %1718 = vmatpush1.msra.mxu0 %v144
    %1719 = vmatprep.subr.mxu0 0.0
    %1720 = vmatpush1.msra.mxu0 %v147
    %1721 = vmatprep.subr.mxu0 0.0
    %1722 = vmatpush1.msra.mxu0 %v150
    %1723 = vmatprep.subr.mxu0 0.0
    %1724 = vmatpush1.msra.mxu0 %v153
    %1725 = vmatprep.subr.mxu0 0.0
    %1726 = vmatpush1.msra.mxu0 %v156
    %1727 = vmatprep.subr.mxu0 0.0
    %1728 = vmatpush1.msra.mxu0 %v159
    %1729 = vmatprep.subr.mxu0 0.0
    %1730 = vmatpush1.msra.mxu0 %v162
    %1731 = vmatprep.subr.mxu0 0.0
    %1732 = vmatpush1.msra.mxu0 %v165
    %1733 = vmatprep.subr.mxu0 0.0
    %1734 = vmatpush1.msra.mxu0 %v168
    %1735 = vmatprep.subr.mxu0 0.0
    %1736 = vmatpush1.msra.mxu0 %v171
    %1737 = vmatprep.subr.mxu0 0.0
    %1738 = vmatpush1.msra.mxu0 %v174
    %1739 = vmatprep.subr.mxu0 0.0
    %1740 = vmatpush1.msra.mxu0 0.0
    %1741 = vmatprep.subr.mxu0 0.0
    %1742 = vmatpush1.msra.mxu0 0.0
    %1743 = vmatprep.subr.mxu0 0.0
    %1744 = vmatpush1.msra.mxu0 0.0
    %1745 = vmatprep.subr.mxu0 0.0
    %1746 = vmatpush1.msra.mxu0 0.0
    %1747 = vmatprep.subr.mxu0 0.0
    %1748 = vmatpush1.msra.mxu0 0.0
    %1749 = vmatprep.subr.mxu0 0.0
    %1750 = vmatpush1.msra.mxu0 0.0
    %1751 = vmatprep.subr.mxu0 0.0
    %1752 = vmatpush1.msra.mxu0 0.0
    %1753 = vmatprep.subr.mxu0 0.0
    %1754 = vmatpush1.msra.mxu0 0.0
    %1755 = vmatprep.subr.mxu0 0.0
    %1756 = vmatpush1.msra.mxu0 0.0
    %1757 = vmatprep.subr.mxu0 0.0
    %1758 = vmatpush1.msra.mxu0 0.0
    %1759 = vmatprep.subr.mxu0 0.0
    %1760 = vmatpush1.msra.mxu0 0.0
    %1761 = vmatprep.subr.mxu0 0.0
    %1762 = vmatpush1.msra.mxu0 0.0
    %1763 = vmatprep.subr.mxu0 0.0
    %1764 = vmatpush1.msra.mxu0 0.0
    %1765 = vmatprep.subr.mxu0 0.0
    %1766 = vmatpush1.msra.mxu0 0.0
    %1767 = vmatprep.subr.mxu0 0.0
    %1768 = vmatpush1.msra.mxu0 0.0
    %1769 = vmatprep.subr.mxu0 0.0
    %1770 = vmatpush1.msra.mxu0 0.0
    %1771 = vmatprep.subr.mxu0 0.0
    %1772 = vmatpush1.msra.mxu0 0.0
    %1773 = vmatprep.subr.mxu0 0.0
    %1774 = vmatpush1.msra.mxu0 0.0
    %1775 = vmatprep.subr.mxu0 0.0
    %1776 = vmatpush1.msra.mxu0 0.0
    %1777 = vmatprep.subr.mxu0 0.0
    %1778 = vmatpush1.msra.mxu0 0.0
    %1779 = vmatprep.mubr.f32.mxu0 0.0
    %1780 = vmatmul.mubr.f32.gmra.mrb[0].mxu0 %v1642
    %v1781 = vpop.f32.mrb[0].mxu0
    %v1782 = vadd.f32 0.0, %v1781
    %v1783 = vpop.f32.mrb[0].mxu0
    %1784 = vdwg.mxu0
    %v1786 = vrot.slane %v1711, 2
    %v1788 = vadd.f32 %v136, %v1786
    %v1789 = vxor.u32 %v1788, 2147483648
    %v1790 = vmul.f32 %v1789, 1.442695
    %v1791 = vpow.pop %v1790
    %v1792 = vadd.f32 %v1791, 1.0
    %v1793 = vrcp.pop %v1792
    %v1794 = vmul.f32 1.0, %v1793
    %v1795 = vadd.f32 %v1711, %v275
    %v1797 = vrot.slane %v1795, 2
    %1798 = vrot.lane.b32.xlu0 %v1797, 64
    %v1799 = vpop.permute.xlu0 %1798
    %v1801 = vmul.f32 %v1794, %v1799
    %1803 = vrot.lane.b32.xlu0 %v1801, 64
    %v1804 = vpop.permute.xlu0 %1803
    %v1806 = vadd.f32 %v136, %v1804
    %v1807 = vtanh.pop %v1806
    %v1808 = vsub.f32 1.0, %v1794
    %1810 = vrot.lane.b32.xlu0 %v1807, 96
    %v1811 = vpop.permute.xlu0 %1810
    %v1813 = vmul.f32 %v1808, %v1811
    %v1815 = vrot.slane %v1604, 2
    %1816 = vrot.lane.b32.xlu0 %v1815, 32
    %v1817 = vpop.permute.xlu0 %1816
    %v1819 = vmul.f32 %v1794, %v1817
    %v1820 = vadd.f32 %v1813, %v1819
    %v1822 = vrot.slane %v1820, 6
    %1823 = vrot.lane.b32.xlu0 %v1822, 96
    %v1824 = vpop.permute.xlu0 %1823
    %v1826 = vsel %vm187, %v1824, 0.0
    %v1827 = vsel %vm187, %v1824, %v1604
    %v1828 = vadd.f32 %v1782, %v495
    %v1829 = vadd.f32 %v1828, %v1713
    %v1830 = vxor.u32 %v1829, 2147483648
    %v1831 = vmul.f32 %v1830, 1.442695
    %v1832 = vpow.pop %v1831
    %v1833 = vadd.f32 %v1832, 1.0
    %v1834 = vrcp.pop %v1833
    %v1835 = vmul.f32 1.0, %v1834
    %v1836 = vadd.f32 %v1713, %v506
    %1838 = vrot.lane.b32.xlu0 %v1836, 64
    %v1839 = vpop.permute.xlu0 %1838
    %v1841 = vmul.f32 %v1835, %v1839
    %1843 = vrot.lane.b32.xlu0 %v1841, 64
    %v1844 = vpop.permute.xlu0 %1843
    %v1846 = vadd.f32 %v1828, %v1844
    %v1847 = vtanh.pop %v1846
    %v1848 = vsub.f32 1.0, %v1835
    %1850 = vrot.lane.b32.xlu0 %v1847, 96
    %v1851 = vpop.permute.xlu0 %1850
    %v1853 = vmul.f32 %v1848, %v1851
    %v1854 = vmul.f32 %v1835, %v1634
    %v1855 = vadd.f32 %v1853, %v1854
    %v1856 = vsel %vm186, %v1855, 0.0
    %v1857 = vsel %vm186, %v1855, %v1634
    %1859 = vrot.lane.b32.xlu0 %v1826, 64
    %v1860 = vpop.permute.xlu0 %1859
    %v1862 = vsel %vm57, %v1827, %v1857
    %v1863 = vsel %vm306, %v1862, %v1860
    %v1865 = vsel %vm188, %v1863, 0
    %1867 = vmatprep.subr.mxu0 %v140
    %1868 = vmatpush1.msra.mxu0 %v139
    %1869 = vmatprep.subr.mxu0 %v143
    %1870 = vmatpush1.msra.mxu0 %v142
    %1871 = vmatprep.subr.mxu0 %v146
    %1872 = vmatpush1.msra.mxu0 %v145
    %1873 = vmatprep.subr.mxu0 %v149
    %1874 = vmatpush1.msra.mxu0 %v148
    %1875 = vmatprep.subr.mxu0 %v152
    %1876 = vmatpush1.msra.mxu0 %v151
    %1877 = vmatprep.subr.mxu0 %v155
    %1878 = vmatpush1.msra.mxu0 %v154
    %1879 = vmatprep.subr.mxu0 %v158
    %1880 = vmatpush1.msra.mxu0 %v157
    %1881 = vmatprep.subr.mxu0 %v161
    %1882 = vmatpush1.msra.mxu0 %v160
    %1883 = vmatprep.subr.mxu0 %v164
    %1884 = vmatpush1.msra.mxu0 %v163
    %1885 = vmatprep.subr.mxu0 %v167
    %1886 = vmatpush1.msra.mxu0 %v166
    %1887 = vmatprep.subr.mxu0 %v170
    %1888 = vmatpush1.msra.mxu0 %v169
    %1889 = vmatprep.subr.mxu0 %v173
    %1890 = vmatpush1.msra.mxu0 %v172
    %1891 = vmatprep.subr.mxu0 0.0
    %1892 = vmatpush1.msra.mxu0 0.0
    %1893 = vmatprep.subr.mxu0 0.0
    %1894 = vmatpush1.msra.mxu0 0.0
    %1895 = vmatprep.subr.mxu0 0.0
    %1896 = vmatpush1.msra.mxu0 0.0
    %1897 = vmatprep.subr.mxu0 0.0
    %1898 = vmatpush1.msra.mxu0 0.0
    %1899 = vmatprep.subr.mxu0 0.0
    %1900 = vmatpush1.msra.mxu0 0.0
    %1901 = vmatprep.subr.mxu0 0.0
    %1902 = vmatpush1.msra.mxu0 0.0
    %1903 = vmatprep.subr.mxu0 0.0
    %1904 = vmatpush1.msra.mxu0 0.0
    %1905 = vmatprep.subr.mxu0 0.0
    %1906 = vmatpush1.msra.mxu0 0.0
    %1907 = vmatprep.subr.mxu0 0.0
    %1908 = vmatpush1.msra.mxu0 0.0
    %1909 = vmatprep.subr.mxu0 0.0
    %1910 = vmatpush1.msra.mxu0 0.0
    %1911 = vmatprep.subr.mxu0 0.0
    %1912 = vmatpush1.msra.mxu0 0.0
    %1913 = vmatprep.subr.mxu0 0.0
    %1914 = vmatpush1.msra.mxu0 0.0
    %1915 = vmatprep.subr.mxu0 0.0
    %1916 = vmatpush1.msra.mxu0 0.0
    %1917 = vmatprep.subr.mxu0 0.0
    %1918 = vmatpush1.msra.mxu0 0.0
    %1919 = vmatprep.subr.mxu0 0.0
    %1920 = vmatpush1.msra.mxu0 0.0
    %1921 = vmatprep.subr.mxu0 0.0
    %1922 = vmatpush1.msra.mxu0 0.0
    %1923 = vmatprep.subr.mxu0 0.0
    %1924 = vmatpush1.msra.mxu0 0.0
    %1925 = vmatprep.subr.mxu0 0.0
    %1926 = vmatpush1.msra.mxu0 0.0
    %1927 = vmatprep.subr.mxu0 0.0
    %1928 = vmatpush1.msra.mxu0 0.0
    %1929 = vmatprep.subr.mxu0 0.0
    %1930 = vmatpush1.msra.mxu0 0.0
    %1931 = vmatprep.mubr.f32.mxu0 0.0
    %1932 = vmatmul.mubr.f32.gmra.mrb[0].mxu0 %v1865
    %v1933 = vpop.f32.mrb[0].mxu0
    %v1934 = vpop.f32.mrb[0].mxu0
    %v1935 = vadd.f32 0.0, %v1934
    %1936 = vdwg.mxu0
    %1937 = vmatprep.subr.mxu0 0.0
    %1938 = vmatpush1.msra.mxu0 %v141
    %1939 = vmatprep.subr.mxu0 0.0
    %1940 = vmatpush1.msra.mxu0 %v144
    %1941 = vmatprep.subr.mxu0 0.0
    %1942 = vmatpush1.msra.mxu0 %v147
    %1943 = vmatprep.subr.mxu0 0.0
    %1944 = vmatpush1.msra.mxu0 %v150
    %1945 = vmatprep.subr.mxu0 0.0
    %1946 = vmatpush1.msra.mxu0 %v153
    %1947 = vmatprep.subr.mxu0 0.0
    %1948 = vmatpush1.msra.mxu0 %v156
    %1949 = vmatprep.subr.mxu0 0.0
    %1950 = vmatpush1.msra.mxu0 %v159
    %1951 = vmatprep.subr.mxu0 0.0
    %1952 = vmatpush1.msra.mxu0 %v162
    %1953 = vmatprep.subr.mxu0 0.0
    %1954 = vmatpush1.msra.mxu0 %v165
    %1955 = vmatprep.subr.mxu0 0.0
    %1956 = vmatpush1.msra.mxu0 %v168
    %1957 = vmatprep.subr.mxu0 0.0
    %1958 = vmatpush1.msra.mxu0 %v171
    %1959 = vmatprep.subr.mxu0 0.0
    %1960 = vmatpush1.msra.mxu0 %v174
    %1961 = vmatprep.subr.mxu0 0.0
    %1962 = vmatpush1.msra.mxu0 0.0
    %1963 = vmatprep.subr.mxu0 0.0
    %1964 = vmatpush1.msra.mxu0 0.0
    %1965 = vmatprep.subr.mxu0 0.0
    %1966 = vmatpush1.msra.mxu0 0.0
    %1967 = vmatprep.subr.mxu0 0.0
    %1968 = vmatpush1.msra.mxu0 0.0
    %1969 = vmatprep.subr.mxu0 0.0
    %1970 = vmatpush1.msra.mxu0 0.0
    %1971 = vmatprep.subr.mxu0 0.0
    %1972 = vmatpush1.msra.mxu0 0.0
    %1973 = vmatprep.subr.mxu0 0.0
    %1974 = vmatpush1.msra.mxu0 0.0
    %1975 = vmatprep.subr.mxu0 0.0
    %1976 = vmatpush1.msra.mxu0 0.0
    %1977 = vmatprep.subr.mxu0 0.0
    %1978 = vmatpush1.msra.mxu0 0.0
    %1979 = vmatprep.subr.mxu0 0.0
    %1980 = vmatpush1.msra.mxu0 0.0
    %1981 = vmatprep.subr.mxu0 0.0
    %1982 = vmatpush1.msra.mxu0 0.0
    %1983 = vmatprep.subr.mxu0 0.0
    %1984 = vmatpush1.msra.mxu0 0.0
    %1985 = vmatprep.subr.mxu0 0.0
    %1986 = vmatpush1.msra.mxu0 0.0
    %1987 = vmatprep.subr.mxu0 0.0
    %1988 = vmatpush1.msra.mxu0 0.0
    %1989 = vmatprep.subr.mxu0 0.0
    %1990 = vmatpush1.msra.mxu0 0.0
    %1991 = vmatprep.subr.mxu0 0.0
    %1992 = vmatpush1.msra.mxu0 0.0
    %1993 = vmatprep.subr.mxu0 0.0
    %1994 = vmatpush1.msra.mxu0 0.0
    %1995 = vmatprep.subr.mxu0 0.0
    %1996 = vmatpush1.msra.mxu0 0.0
    %1997 = vmatprep.subr.mxu0 0.0
    %1998 = vmatpush1.msra.mxu0 0.0
    %1999 = vmatprep.subr.mxu0 0.0
    %2000 = vmatpush1.msra.mxu0 0.0
    %2001 = vmatprep.mubr.f32.mxu0 0.0
    %2002 = vmatmul.mubr.f32.gmra.mrb[0].mxu0 %v1865
    %v2003 = vpop.f32.mrb[0].mxu0
    %v2004 = vadd.f32 0.0, %v2003
    %v2005 = vpop.f32.mrb[0].mxu0
    %2006 = vdwg.mxu0
    %v2007 = vadd.f32 %v2004, %v495
    %v2008 = vadd.f32 %v2007, %v1935
    %v2009 = vxor.u32 %v2008, 2147483648
    %v2010 = vmul.f32 %v2009, 1.442695
    %v2011 = vpow.pop %v2010
    %v2012 = vadd.f32 %v2011, 1.0
    %v2013 = vrcp.pop %v2012
    %v2014 = vmul.f32 1.0, %v2013
    %v2015 = vadd.f32 %v1935, %v506
    %2017 = vrot.lane.b32.xlu0 %v2015, 64
    %v2018 = vpop.permute.xlu0 %2017
    %v2020 = vmul.f32 %v2014, %v2018
    %2022 = vrot.lane.b32.xlu0 %v2020, 64
    %v2023 = vpop.permute.xlu0 %2022
    %v2025 = vadd.f32 %v2007, %v2023
    %v2026 = vtanh.pop %v2025
    %v2027 = vsub.f32 1.0, %v2014
    %2029 = vrot.lane.b32.xlu0 %v2026, 96
    %v2030 = vpop.permute.xlu0 %2029
    %v2032 = vmul.f32 %v2027, %v2030
    %v2033 = vmul.f32 %v2014, %v1857
    %v2034 = vadd.f32 %v2032, %v2033
    %v2035 = vsel %vm187, %v2034, 0.0
    %v2036 = vsel %vm187, %v2034, %v1857
    %2038 = vrot.lane.b32.xlu0 %v528, 96
    %v2039 = vpop.permute.xlu0 %2038
    %2042 = vrot.lane.b32.xlu0 %v973, 32
    %v2043 = vpop.permute.xlu0 %2042
    %2046 = vrot.lane.b32.xlu0 %v1186, 64
    %v2047 = vpop.permute.xlu0 %2046
    %2050 = vrot.lane.b32.xlu0 %v1410, 96
    %v2051 = vpop.permute.xlu0 %2050
    %2054 = vrot.lane.b32.xlu0 %v1856, 32
    %v2055 = vpop.permute.xlu0 %2054
    %2058 = vrot.lane.b32.xlu0 %v2035, 64
    %v2059 = vpop.permute.xlu0 %2058
    %v2061 = vsel %vm57, %v2039, %v750
    %v2062 = vsel %vm306, %v2061, %v2043
    %v2063 = vsel %vm188, %v2062, %v2047
    %v2064 = vsel %vm57, %v2051, %v1633
    %v2065 = vsel %vm306, %v2064, %v2055
    %v2066 = vsel %vm188, %v2065, %v2059
    %v2069 = vcombine.low %v2063, %v2066
    %v2071 = vunpack.c.l.s4 1983009808
    %v2072 = vunpack.c.0.s8 %v2071
    %v2073 = vlaneseq
    %v2074 = vshrl.u32 %v2073, 7
    %v2075 = vsub.s32 %v2072, %v2074
    %v2076 = vrot.slane %v2069, %v2075
    %2078 = vst [vmem:[%s5] sm:$0xf] %v2076
    %v2080 = vrot.slane %v2036, 6
    %2081 = vrot.lane.b32.xlu0 %v2080, 96
    %v2082 = vpop.permute.xlu0 %2081
    %vm2084 = vcmask 1041408
    %v2085 = vsel %vm2084, %v1827, %v2082
    %vm2086 = vcmask 257024
    %2087 = vst.msk [vmem:[#allocation5] sm:$0xf] %vm2086, %v2085
    // Predicated region
    $region26: #{chat_encoder_forward.1} parent=1 // pred_check
      _
    $region27: #{chat_encoder_forward.1} parent=1 // pred_check_branch
      %2089 = sbr.rel (0) target = $region29
    $region28: #{chat_encoder_forward.1} parent=1 // pred_region
      _
    $region29: #{chat_encoder_forward.1} parent=1 // pred_fallthru
      _
    // Predicated region
    $region30: #{chat_encoder_forward.1} parent=1 // pred_check
      _
    $region31: #{chat_encoder_forward.1} parent=1 // pred_check_branch
      %2091 = sbr.rel (0) target = $region33
    $region32: #{chat_encoder_forward.1} parent=1 // pred_region
      %s2093 = ssub.s32 64, 64
      %2094 = vsyncadd [#allocation4], %s2093
      %s2096 = sshll.u32 [#allocation5], 4
      %s2097 = int_to_ptr.vmem [resolvable:$true] %s2096
      %2099 = dma.vmem_to_hbm [thread:$0]  %s2097, 64, %s6, [#allocation4]
    $region33: #{chat_encoder_forward.1} parent=1 // pred_fallthru
      _
    // Predicated region
    $region34: #{chat_encoder_forward.1} parent=1 // pred_check
      _
    $region35: #{chat_encoder_forward.1} parent=1 // pred_check_branch
      %2101 = sbr.rel (0) target = $region37
    $region36: #{chat_encoder_forward.1} parent=1 // pred_region
      _
    $region37: #{chat_encoder_forward.1} parent=1 // pred_fallthru
      _
    // Predicated region
    $region38: #{chat_encoder_forward.1} parent=1 // pred_check
      _
    $region39: #{chat_encoder_forward.1} parent=1 // pred_check_branch
      %2103 = sbr.rel (0) target = $region41
    $region40: #{chat_encoder_forward.1} parent=1 // pred_region
      %2104 = dma.done [#allocation4], 64
    $region41: #{chat_encoder_forward.1} parent=1 // pred_fallthru
      _
    %2105 = vsyncpa [#allocation3], 1
    %2106 = vsyncpa [#allocation4], 1

</llo_original>
